<compile_context>
chip_gen: v5e
topology: v5e:2x2
jax: 0.10.0
libtpu: 0.0.40
codegen_flags: <defaults>
</compile_context>

<pallas_src>
import functools

import jax
import jax.numpy as jnp
from jax.experimental import pallas as pl
from jax.experimental.pallas import tpu as pltpu


# ----------------------------------------------------------------------------
# Fused decoder kernel: n_layer transformer blocks, weights resident in VMEM
# ----------------------------------------------------------------------------
def decoder_kernel(x0_ref, vecs_ref, b1_ref, wqkv_ref, wo_ref, w1_ref, w2_ref,
                   o_ref, ctx_ref, *, n_head, n_layer, ff_chunk):
    Bt, N, D = x0_ref.shape
    M = Bt * N
    dh = D // n_head
    d_ff = w1_ref.shape[-1]

    def layer_norm(v, g, b):
        mu = jnp.mean(v, axis=-1, keepdims=True)
        var = jnp.mean((v - mu) ** 2, axis=-1, keepdims=True)
        return (v - mu) * jax.lax.rsqrt(var + 1e-5) * g + b

    # residual stream kept in f32; rowwise GEMMs run on the flattened (Bt*N, D) slab
    x = x0_ref[...].astype(jnp.float32).reshape(M, D)

    for l in range(n_layer):                        # static unroll over layers
        vecs = vecs_ref[l].astype(jnp.float32)      # (9, D) packed small vectors
        g1, be1 = vecs[0:1], vecs[1:2]              # LN1 gamma/beta
        bq, bk, bv, bo = vecs[2:3], vecs[3:4], vecs[4:5], vecs[5:6]
        g2, be2, b2 = vecs[6:7], vecs[7:8], vecs[8:9]
        b1 = b1_ref[l].astype(jnp.float32)          # (1, d_ff)
        wqkv = wqkv_ref[l]                          # (D, 3D)  bf16 (scale folded in)
        wo = wo_ref[l]                              # (D, D)   bf16
        w1 = w1_ref[l]                              # (D, d_ff) bf16
        w2 = w2_ref[l]                              # (d_ff, D) bf16

        # --- multi-head self attention ---
        xn = layer_norm(x, g1, be1)
        qkv = jnp.dot(xn.astype(jnp.bfloat16), wqkv,
                      preferred_element_type=jnp.float32)        # (M, 3D) f32 acc
        # cast ONCE to bf16; the f32 (M, 3D) qkv dies here
        q = (qkv[:, 0:D] + bq).astype(jnp.bfloat16)              # 1/sqrt(dh) pre-folded
        k = (qkv[:, D:2 * D] + bk).astype(jnp.bfloat16)
        v = (qkv[:, 2 * D:3 * D] + bv).astype(jnp.bfloat16)

        for h in range(n_head):
            sl = slice(h * dh, (h + 1) * dh)
            qh = q[:, sl].reshape(Bt, N, dh)                     # bf16 slices
            kh = k[:, sl].reshape(Bt, N, dh)
            vh = v[:, sl].reshape(Bt, N, dh)
            s = jnp.einsum('bqd,bkd->bqk', qh, kh,
                           preferred_element_type=jnp.float32)   # scale already applied
            s = s - jnp.max(s, axis=-1, keepdims=True)
            p = jnp.exp(s)
            p = p * pl.reciprocal(jnp.sum(p, axis=-1, keepdims=True), approx=True)
            oh = jnp.einsum('bqk,bkd->bqd', p.astype(jnp.bfloat16), vh,
                            preferred_element_type=jnp.float32)  # (Bt, N, dh)
            # write head into the (M, D) context buffer; temps die at the store
            ctx_ref[:, sl] = oh.reshape(M, dh)

        # single full-D-contraction output projection (near-full MXU efficiency)
        attn = jnp.dot(ctx_ref[...].astype(jnp.bfloat16), wo,
                       preferred_element_type=jnp.float32) + bo
        x = x + attn                                # attention residual
        # TODO(synk): dropout_p is a no-op here (eval-mode forward).

        # --- feed-forward (GELU MLP), tiled over d_ff to cap the live activation ---
        xn2 = layer_norm(x, g2, be2).astype(jnp.bfloat16)
        acc = jnp.zeros((M, D), jnp.float32)
        for c0 in range(0, d_ff, ff_chunk):
            c1 = min(c0 + ff_chunk, d_ff)
            h1 = jnp.dot(xn2, w1[:, c0:c1],
                         preferred_element_type=jnp.float32) + b1[:, c0:c1]
            # TODO(synk): tanh-approx GELU; PyTorch nn.GELU() default is exact erf.
            h1 = jax.nn.gelu(h1, approximate=True).astype(jnp.bfloat16)
            acc = acc + jnp.dot(h1, w2[c0:c1, :],
                                preferred_element_type=jnp.float32)
        x = x + acc + b2                            # MLP residual (bias added once)

    o_ref[...] = x.reshape(Bt, N, D).astype(o_ref.dtype)


# ----------------------------------------------------------------------------
# Wrapper: unshuffle in XLA, pack/stack weights, single pallas_call over batch tiles
# ----------------------------------------------------------------------------
def decoder_forward(z, unmask_bool, mask_tok, layer_params, n_head,
                    *, batch_tile=None, ff_chunk=512):
    B, N = unmask_bool.shape
    D = z.shape[-1]
    n_layer = len(layer_params)
    dh = D // n_head
    scale = 1.0 / (dh ** 0.5)

    # ---- 1) unshuffle: row-major boolean scatter of z into mask tokens --------
    # Done in plain JAX; XLA fuses the gather + select into one pass.
    # TODO(synk): avoid materializing the (B, N, D) slab in HBM by scalar-prefetching
    # per-token source indices (SMEM) and doing the row select in-kernel.
    z_flat = z.reshape(-1, D)
    flat_mask = unmask_bool.reshape(-1)
    gather_idx = jnp.clip(jnp.cumsum(flat_mask.astype(jnp.int32)) - 1,
                          0, z_flat.shape[0] - 1)
    z_gathered = jnp.take(z_flat, gather_idx, axis=0).reshape(B, N, D)
    x0 = jnp.where(unmask_bool[:, :, None], z_gathered,
                   mask_tok.reshape(1, 1, D)).astype(z.dtype)

    # ---- 2) pack per-layer weights (fold 1/sqrt(dh) into Wq, bq), stack on L --
    vecs_l, b1_l, wqkv_l, wo_l, w1_l, w2_l = [], [], [], [], [], []
    for p in layer_params:
        (g1, be1, wq, bq, wk, bk, wv, bv, wo, bo, g2, be2, w1, b1, w2, b2) = p
        vecs_l.append(jnp.concatenate(
            [g1, be1, bq * scale, bk, bv, bo, g2, be2, b2], axis=0))       # (9, D)
        b1_l.append(b1)                                                    # (1, d_ff)
        wqkv_l.append(jnp.concatenate([wq * scale, wk, wv],
                                      axis=1).astype(jnp.bfloat16))        # (D, 3D)
        wo_l.append(wo.astype(jnp.bfloat16))
        w1_l.append(w1.astype(jnp.bfloat16))
        w2_l.append(w2.astype(jnp.bfloat16))
    vecs_a = jnp.stack(vecs_l)      # (L, 9, D)    f32
    b1_a = jnp.stack(b1_l)          # (L, 1, d_ff) f32
    wqkv_a = jnp.stack(wqkv_l)      # (L, D, 3D)   bf16
    wo_a = jnp.stack(wo_l)          # (L, D, D)    bf16
    w1_a = jnp.stack(w1_l)          # (L, D, d_ff) bf16
    w2_a = jnp.stack(w2_l)          # (L, d_ff, D) bf16
    d_ff = w1_a.shape[-1]
    ff_chunk = min(ff_chunk, d_ff)

    # ---- 3) VMEM budget: derive limit from the chip, size the batch tile -------
    try:
        vmem_cap = int(pltpu.get_tpu_info().vmem_capacity_bytes)
    except Exception:
        vmem_cap = 64 * 1024 * 1024          # conservative default (v7x per-core VMEM)
    vmem_limit = int(min(100 * 1024 * 1024, (vmem_cap * 3) // 4))

    weight_bytes = sum(int(a.size) * a.dtype.itemsize
                       for a in (vecs_a, b1_a, wqkv_a, wo_a, w1_a, w2_a))
    # rough per-token live bytes inside one layer: f32 x/xn/qkv/acc + scores row
    # + MLP chunk, plus bf16 q/k/v/ctx
    act_per_tok = 4 * (6 * D + ff_chunk + N) + 2 * (4 * D)
    if batch_tile is None:
        budget = max(vmem_limit - 2 * weight_bytes - (2 << 20), 1 << 20)
        max_rows = max(1, budget // (act_per_tok * N * 3))    # 3x slack: dbl-buffer/IO/spill
        cap = max(1, min(max_rows, B // 2 if B > 1 else 1))   # keep grid >= 2 (v7x: 2 TCs)
        batch_tile = max(d for d in range(1, cap + 1) if B % d == 0)
    assert B % batch_tile == 0, "batch must be divisible by batch_tile"
    grid = (B // batch_tile,)

    kernel = functools.partial(decoder_kernel, n_head=n_head,
                               n_layer=n_layer, ff_chunk=ff_chunk)

    return pl.pallas_call(
        kernel,
        out_shape=jax.ShapeDtypeStruct((B, N, D), z.dtype),
        grid=grid,
        in_specs=[
            pl.BlockSpec((batch_tile, N, D), lambda b: (b, 0, 0)),   # unshuffled tokens
            pl.BlockSpec(vecs_a.shape, lambda b: (0, 0, 0)),         # packed small vectors
            pl.BlockSpec(b1_a.shape, lambda b: (0, 0, 0)),           # MLP bias 1
            pl.BlockSpec(wqkv_a.shape, lambda b: (0, 0, 0)),         # fused QKV weights
            pl.BlockSpec(wo_a.shape, lambda b: (0, 0, 0)),           # attn out projection
            pl.BlockSpec(w1_a.shape, lambda b: (0, 0, 0)),           # MLP weight 1
            pl.BlockSpec(w2_a.shape, lambda b: (0, 0, 0)),           # MLP weight 2
        ],
        out_specs=pl.BlockSpec((batch_tile, N, D), lambda b: (b, 0, 0)),
        scratch_shapes=[pltpu.VMEM((batch_tile * N, D), jnp.float32)],  # per-head context
        compiler_params=pltpu.CompilerParams(
            dimension_semantics=("parallel",),
            vmem_limit_bytes=vmem_limit),
    )(x0, vecs_a, b1_a, wqkv_a, wo_a, w1_a, w2_a)


# ----------------------------------------------------------------------------
# Main
# ----------------------------------------------------------------------------
if __name__ == "__main__":
    B, N, D = 2, 8, 32          # batch, full sequence length, d_model
    d_ff, n_head = 64, 4
    n_dec_layer = 2
    n_unmask = 4                # visible tokens per sample

    key = jax.random.PRNGKey(0)
    keys = jax.random.split(key, 16)

    # mask_tok ~ randn(1, 1, d_model)
    mask_tok = jax.random.normal(keys[0], (1, 1, D), jnp.float32)

    def w(k, shape, scale=0.02):
        return jax.random.normal(k, shape, jnp.float32) * scale

    # one EncoderBlock's parameters
    block = (
        jnp.ones((1, D), jnp.float32),               # LN1 gamma
        jnp.zeros((1, D), jnp.float32),              # LN1 beta
        w(keys[1], (D, D)), jnp.zeros((1, D), jnp.float32),        # Wq, bq
        w(keys[2], (D, D)), jnp.zeros((1, D), jnp.float32),        # Wk, bk
        w(keys[3], (D, D)), jnp.zeros((1, D), jnp.float32),        # Wv, bv
        w(keys[4], (D, D)), jnp.zeros((1, D), jnp.float32),        # Wo, bo
        jnp.ones((1, D), jnp.float32),               # LN2 gamma
        jnp.zeros((1, D), jnp.float32),              # LN2 beta
        w(keys[5], (D, d_ff)), jnp.zeros((1, d_ff), jnp.float32),  # W1, b1
        w(keys[6], (d_ff, D)), jnp.zeros((1, D), jnp.float32),     # W2, b2
    )
    # Decoder deepcopies one block at init -> identical per-layer params here;
    # the kernel handles distinct per-layer weights (stacked on a layer axis).
    layer_params = [block] * n_dec_layer

    # latent tokens z: (B, n_unmask, D)
    z = jax.random.normal(keys[7], (B, n_unmask, D), jnp.float32)

    # boolean mask with exactly n_unmask True per row (tie-free construction)
    scores = jax.random.uniform(keys[8], (B, N))
    order = jnp.argsort(scores, axis=1)
    unmask_bool = jnp.zeros((B, N), bool).at[
        jnp.arange(B)[:, None], order[:, :n_unmask]].set(True)

    out = decoder_forward(z, unmask_bool, mask_tok, layer_params, n_head)
    out = jax.block_until_ready(out)
    assert out.shape == (B, N, D)
    print("KERNEL_OK")
</pallas_src>

<mosaic_0001>
module attributes {stable_mosaic.version = 11 : i64} {
  func.func @decoder_kernel(%arg0: i32, %arg1: memref<1x8x32xf32, #tpu.memory_space<vmem>>, %arg2: memref<2x9x32xf32, #tpu.memory_space<vmem>>, %arg3: memref<2x1x64xf32, #tpu.memory_space<vmem>>, %arg4: memref<2x32x96xbf16, #tpu.memory_space<vmem>>, %arg5: memref<2x32x32xbf16, #tpu.memory_space<vmem>>, %arg6: memref<2x32x64xbf16, #tpu.memory_space<vmem>>, %arg7: memref<2x64x32xbf16, #tpu.memory_space<vmem>>, %arg8: memref<1x8x32xf32, #tpu.memory_space<vmem>>, %arg9: memref<8x32xf32, #tpu.memory_space<vmem>>) attributes {dimension_semantics = [#tpu.dimension_semantics<parallel>], iteration_bounds = array<i64: 2>, scalar_prefetch = 0 : i64, scratch_operands = 1 : i64, tpu.core_type = #tpu.core_type<tc>, window_params = [{transform_indices = @transform_0, window_bounds = array<i64: 1, 8, 32>}, {pipeline_mode = #tpu.pipeline_mode<synchronous>, transform_indices = @transform_1, window_bounds = array<i64: 2, 9, 32>}, {pipeline_mode = #tpu.pipeline_mode<synchronous>, transform_indices = @transform_2, window_bounds = array<i64: 2, 1, 64>}, {pipeline_mode = #tpu.pipeline_mode<synchronous>, transform_indices = @transform_3, window_bounds = array<i64: 2, 32, 96>}, {pipeline_mode = #tpu.pipeline_mode<synchronous>, transform_indices = @transform_4, window_bounds = array<i64: 2, 32, 32>}, {pipeline_mode = #tpu.pipeline_mode<synchronous>, transform_indices = @transform_5, window_bounds = array<i64: 2, 32, 64>}, {pipeline_mode = #tpu.pipeline_mode<synchronous>, transform_indices = @transform_6, window_bounds = array<i64: 2, 64, 32>}, {transform_indices = @transform_7, window_bounds = array<i64: 1, 8, 32>}]} {
    %c0 = arith.constant 0 : index
    %c0_0 = arith.constant 0 : index
    %c0_1 = arith.constant 0 : index
    %0 = vector.load %arg1[%c0, %c0_0, %c0_1] : memref<1x8x32xf32, #tpu.memory_space<vmem>>, vector<1x8x32xf32>
    %1 = vector.shape_cast %0 : vector<1x8x32xf32> to vector<8x32xf32>
    %c0_2 = arith.constant 0 : index
    %c0_3 = arith.constant 0 : index
    %c0_4 = arith.constant 0 : index
    %2 = vector.load %arg2[%c0_2, %c0_3, %c0_4] : memref<2x9x32xf32, #tpu.memory_space<vmem>>, vector<1x9x32xf32>
    %3 = vector.shape_cast %2 : vector<1x9x32xf32> to vector<9x32xf32>
    %4 = vector.extract_strided_slice %3 {offsets = [0, 0], sizes = [1, 32], strides = [1, 1]} : vector<9x32xf32> to vector<1x32xf32>
    %5 = vector.extract_strided_slice %3 {offsets = [1, 0], sizes = [1, 32], strides = [1, 1]} : vector<9x32xf32> to vector<1x32xf32>
    %6 = vector.extract_strided_slice %3 {offsets = [2, 0], sizes = [1, 32], strides = [1, 1]} : vector<9x32xf32> to vector<1x32xf32>
    %7 = vector.extract_strided_slice %3 {offsets = [3, 0], sizes = [1, 32], strides = [1, 1]} : vector<9x32xf32> to vector<1x32xf32>
    %8 = vector.extract_strided_slice %3 {offsets = [4, 0], sizes = [1, 32], strides = [1, 1]} : vector<9x32xf32> to vector<1x32xf32>
    %9 = vector.extract_strided_slice %3 {offsets = [5, 0], sizes = [1, 32], strides = [1, 1]} : vector<9x32xf32> to vector<1x32xf32>
    %10 = vector.extract_strided_slice %3 {offsets = [6, 0], sizes = [1, 32], strides = [1, 1]} : vector<9x32xf32> to vector<1x32xf32>
    %11 = vector.extract_strided_slice %3 {offsets = [7, 0], sizes = [1, 32], strides = [1, 1]} : vector<9x32xf32> to vector<1x32xf32>
    %12 = vector.extract_strided_slice %3 {offsets = [8, 0], sizes = [1, 32], strides = [1, 1]} : vector<9x32xf32> to vector<1x32xf32>
    %c0_5 = arith.constant 0 : index
    %c0_6 = arith.constant 0 : index
    %c0_7 = arith.constant 0 : index
    %13 = vector.load %arg3[%c0_5, %c0_6, %c0_7] : memref<2x1x64xf32, #tpu.memory_space<vmem>>, vector<1x1x64xf32>
    %14 = vector.shape_cast %13 : vector<1x1x64xf32> to vector<1x64xf32>
    %c0_8 = arith.constant 0 : index
    %c0_9 = arith.constant 0 : index
    %c0_10 = arith.constant 0 : index
    %15 = vector.load %arg4[%c0_8, %c0_9, %c0_10] : memref<2x32x96xbf16, #tpu.memory_space<vmem>>, vector<1x32x96xbf16>
    %16 = vector.shape_cast %15 : vector<1x32x96xbf16> to vector<32x96xbf16>
    %c0_11 = arith.constant 0 : index
    %c0_12 = arith.constant 0 : index
    %c0_13 = arith.constant 0 : index
    %17 = vector.load %arg5[%c0_11, %c0_12, %c0_13] : memref<2x32x32xbf16, #tpu.memory_space<vmem>>, vector<1x32x32xbf16>
    %18 = vector.shape_cast %17 : vector<1x32x32xbf16> to vector<32x32xbf16>
    %c0_14 = arith.constant 0 : index
    %c0_15 = arith.constant 0 : index
    %c0_16 = arith.constant 0 : index
    %19 = vector.load %arg6[%c0_14, %c0_15, %c0_16] : memref<2x32x64xbf16, #tpu.memory_space<vmem>>, vector<1x32x64xbf16>
    %20 = vector.shape_cast %19 : vector<1x32x64xbf16> to vector<32x64xbf16>
    %c0_17 = arith.constant 0 : index
    %c0_18 = arith.constant 0 : index
    %c0_19 = arith.constant 0 : index
    %21 = vector.load %arg7[%c0_17, %c0_18, %c0_19] : memref<2x64x32xbf16, #tpu.memory_space<vmem>>, vector<1x64x32xbf16>
    %22 = vector.shape_cast %21 : vector<1x64x32xbf16> to vector<64x32xbf16>
    %cst = arith.constant dense<0.000000e+00> : vector<8xf32>
    %23 = vector.multi_reduction <add>, %1, %cst [1] : vector<8x32xf32> to vector<8xf32>
    %24 = vector.shape_cast %23 : vector<8xf32> to vector<8x1xf32>
    %cst_20 = arith.constant 3.200000e+01 : f32
    %25 = vector.broadcast %cst_20 : f32 to vector<8x1xf32>
    %26 = arith.divf %24, %25 : vector<8x1xf32>
    %27 = vector.broadcast %26 : vector<8x1xf32> to vector<8x32xf32>
    %28 = arith.subf %1, %27 : vector<8x32xf32>
    %29 = arith.mulf %28, %28 : vector<8x32xf32>
    %cst_21 = arith.constant dense<0.000000e+00> : vector<8xf32>
    %30 = vector.multi_reduction <add>, %29, %cst_21 [1] : vector<8x32xf32> to vector<8xf32>
    %31 = vector.shape_cast %30 : vector<8xf32> to vector<8x1xf32>
    %cst_22 = arith.constant 3.200000e+01 : f32
    %32 = vector.broadcast %cst_22 : f32 to vector<8x1xf32>
    %33 = arith.divf %31, %32 : vector<8x1xf32>
    %34 = vector.broadcast %26 : vector<8x1xf32> to vector<8x32xf32>
    %35 = arith.subf %1, %34 : vector<8x32xf32>
    %cst_23 = arith.constant 9.99999974E-6 : f32
    %36 = vector.broadcast %cst_23 : f32 to vector<8x1xf32>
    %37 = arith.addf %33, %36 : vector<8x1xf32>
    %38 = math.rsqrt %37 : vector<8x1xf32>
    %39 = vector.broadcast %38 : vector<8x1xf32> to vector<8x32xf32>
    %40 = arith.mulf %35, %39 : vector<8x32xf32>
    %41 = vector.broadcast %4 : vector<1x32xf32> to vector<8x32xf32>
    %42 = arith.mulf %40, %41 : vector<8x32xf32>
    %43 = vector.broadcast %5 : vector<1x32xf32> to vector<8x32xf32>
    %44 = arith.addf %42, %43 : vector<8x32xf32>
    %45 = arith.truncf %44 : vector<8x32xf32> to vector<8x32xbf16>
    %cst_24 = arith.constant dense<0.000000e+00> : vector<8x96xf32>
    %46 = tpu.matmul %45, %16, %cst_24 {dimension_numbers = #tpu.dot_dimension_numbers<[1], [0], [0], [1], [0, 0, 1, 1], [], []>} : vector<8x32xbf16>, vector<32x96xbf16>, vector<8x96xf32> -> vector<8x96xf32>
    %47 = vector.extract_strided_slice %46 {offsets = [0, 0], sizes = [8, 32], strides = [1, 1]} : vector<8x96xf32> to vector<8x32xf32>
    %48 = vector.broadcast %6 : vector<1x32xf32> to vector<8x32xf32>
    %49 = arith.addf %47, %48 : vector<8x32xf32>
    %50 = arith.truncf %49 : vector<8x32xf32> to vector<8x32xbf16>
    %51 = vector.extract_strided_slice %46 {offsets = [0, 32], sizes = [8, 32], strides = [1, 1]} : vector<8x96xf32> to vector<8x32xf32>
    %52 = vector.broadcast %7 : vector<1x32xf32> to vector<8x32xf32>
    %53 = arith.addf %51, %52 : vector<8x32xf32>
    %54 = arith.truncf %53 : vector<8x32xf32> to vector<8x32xbf16>
    %55 = vector.extract_strided_slice %46 {offsets = [0, 64], sizes = [8, 32], strides = [1, 1]} : vector<8x96xf32> to vector<8x32xf32>
    %56 = vector.broadcast %8 : vector<1x32xf32> to vector<8x32xf32>
    %57 = arith.addf %55, %56 : vector<8x32xf32>
    %58 = arith.truncf %57 : vector<8x32xf32> to vector<8x32xbf16>
    %59 = vector.extract_strided_slice %50 {offsets = [0, 0], sizes = [8, 8], strides = [1, 1]} : vector<8x32xbf16> to vector<8x8xbf16>
    %60 = vector.shape_cast %59 : vector<8x8xbf16> to vector<1x8x8xbf16>
    %61 = vector.extract_strided_slice %54 {offsets = [0, 0], sizes = [8, 8], strides = [1, 1]} : vector<8x32xbf16> to vector<8x8xbf16>
    %62 = vector.shape_cast %61 : vector<8x8xbf16> to vector<1x8x8xbf16>
    %63 = vector.extract_strided_slice %58 {offsets = [0, 0], sizes = [8, 8], strides = [1, 1]} : vector<8x32xbf16> to vector<8x8xbf16>
    %64 = vector.shape_cast %63 : vector<8x8xbf16> to vector<1x8x8xbf16>
    "tpu.trace_start"() <{level = 10 : i32, message = "bqd,bkd->bqk"}> : () -> ()
    %cst_25 = arith.constant dense<0.000000e+00> : vector<1x8x8xf32>
    %65 = tpu.matmul %60, %62, %cst_25 {dimension_numbers = #tpu.dot_dimension_numbers<[2], [2], [1], [1], [0, 0, 0, 1, 1, 1], [0], [0]>} : vector<1x8x8xbf16>, vector<1x8x8xbf16>, vector<1x8x8xf32> -> vector<1x8x8xf32>
    "tpu.trace_stop"() : () -> ()
    %cst_26 = arith.constant dense<0xFF800000> : vector<1x8xf32>
    %66 = vector.multi_reduction <maximumf>, %65, %cst_26 [2] : vector<1x8x8xf32> to vector<1x8xf32>
    %67 = vector.shape_cast %66 : vector<1x8xf32> to vector<1x8x1xf32>
    %68 = vector.broadcast %67 : vector<1x8x1xf32> to vector<1x8x8xf32>
    %69 = arith.subf %65, %68 : vector<1x8x8xf32>
    %70 = math.exp %69 : vector<1x8x8xf32>
    %cst_27 = arith.constant dense<0.000000e+00> : vector<1x8xf32>
    %71 = vector.multi_reduction <add>, %70, %cst_27 [2] : vector<1x8x8xf32> to vector<1x8xf32>
    %72 = vector.shape_cast %71 : vector<1x8xf32> to vector<1x8x1xf32>
    %73 = tpu.reciprocal %72 {approx = true} : vector<1x8x1xf32> -> vector<1x8x1xf32>
    %74 = vector.broadcast %73 : vector<1x8x1xf32> to vector<1x8x8xf32>
    %75 = arith.mulf %70, %74 : vector<1x8x8xf32>
    %76 = arith.truncf %75 : vector<1x8x8xf32> to vector<1x8x8xbf16>
    "tpu.trace_start"() <{level = 10 : i32, message = "bqk,bkd->bqd"}> : () -> ()
    %cst_28 = arith.constant dense<0.000000e+00> : vector<1x8x8xf32>
    %77 = tpu.matmul %76, %64, %cst_28 {dimension_numbers = #tpu.dot_dimension_numbers<[2], [1], [1], [2], [0, 0, 0, 1, 1, 2], [0], [0]>} : vector<1x8x8xbf16>, vector<1x8x8xbf16>, vector<1x8x8xf32> -> vector<1x8x8xf32>
    "tpu.trace_stop"() : () -> ()
    %78 = vector.shape_cast %77 : vector<1x8x8xf32> to vector<8x8xf32>
    %c0_29 = arith.constant 0 : index
    %c0_30 = arith.constant 0 : index
    %79 = vector.load %arg9[%c0_29, %c0_30] : memref<8x32xf32, #tpu.memory_space<vmem>>, vector<8x8xf32>
    tpu.vector_store %arg9[%c0_29, %c0_30], %78 {strides = array<i32>} : memref<8x32xf32, #tpu.memory_space<vmem>>, vector<8x8xf32>,
    %80 = vector.extract_strided_slice %50 {offsets = [0, 8], sizes = [8, 8], strides = [1, 1]} : vector<8x32xbf16> to vector<8x8xbf16>
    %81 = vector.shape_cast %80 : vector<8x8xbf16> to vector<1x8x8xbf16>
    %82 = vector.extract_strided_slice %54 {offsets = [0, 8], sizes = [8, 8], strides = [1, 1]} : vector<8x32xbf16> to vector<8x8xbf16>
    %83 = vector.shape_cast %82 : vector<8x8xbf16> to vector<1x8x8xbf16>
    %84 = vector.extract_strided_slice %58 {offsets = [0, 8], sizes = [8, 8], strides = [1, 1]} : vector<8x32xbf16> to vector<8x8xbf16>
    %85 = vector.shape_cast %84 : vector<8x8xbf16> to vector<1x8x8xbf16>
    "tpu.trace_start"() <{level = 10 : i32, message = "bqd,bkd->bqk"}> : () -> ()
    %cst_31 = arith.constant dense<0.000000e+00> : vector<1x8x8xf32>
    %86 = tpu.matmul %81, %83, %cst_31 {dimension_numbers = #tpu.dot_dimension_numbers<[2], [2], [1], [1], [0, 0, 0, 1, 1, 1], [0], [0]>} : vector<1x8x8xbf16>, vector<1x8x8xbf16>, vector<1x8x8xf32> -> vector<1x8x8xf32>
    "tpu.trace_stop"() : () -> ()
    %cst_32 = arith.constant dense<0xFF800000> : vector<1x8xf32>
    %87 = vector.multi_reduction <maximumf>, %86, %cst_32 [2] : vector<1x8x8xf32> to vector<1x8xf32>
    %88 = vector.shape_cast %87 : vector<1x8xf32> to vector<1x8x1xf32>
    %89 = vector.broadcast %88 : vector<1x8x1xf32> to vector<1x8x8xf32>
    %90 = arith.subf %86, %89 : vector<1x8x8xf32>
    %91 = math.exp %90 : vector<1x8x8xf32>
    %cst_33 = arith.constant dense<0.000000e+00> : vector<1x8xf32>
    %92 = vector.multi_reduction <add>, %91, %cst_33 [2] : vector<1x8x8xf32> to vector<1x8xf32>
    %93 = vector.shape_cast %92 : vector<1x8xf32> to vector<1x8x1xf32>
    %94 = tpu.reciprocal %93 {approx = true} : vector<1x8x1xf32> -> vector<1x8x1xf32>
    %95 = vector.broadcast %94 : vector<1x8x1xf32> to vector<1x8x8xf32>
    %96 = arith.mulf %91, %95 : vector<1x8x8xf32>
    %97 = arith.truncf %96 : vector<1x8x8xf32> to vector<1x8x8xbf16>
    "tpu.trace_start"() <{level = 10 : i32, message = "bqk,bkd->bqd"}> : () -> ()
    %cst_34 = arith.constant dense<0.000000e+00> : vector<1x8x8xf32>
    %98 = tpu.matmul %97, %85, %cst_34 {dimension_numbers = #tpu.dot_dimension_numbers<[2], [1], [1], [2], [0, 0, 0, 1, 1, 2], [0], [0]>} : vector<1x8x8xbf16>, vector<1x8x8xbf16>, vector<1x8x8xf32> -> vector<1x8x8xf32>
    "tpu.trace_stop"() : () -> ()
    %99 = vector.shape_cast %98 : vector<1x8x8xf32> to vector<8x8xf32>
    %c0_35 = arith.constant 0 : index
    %c8 = arith.constant 8 : index
    %100 = vector.load %arg9[%c0_35, %c8] : memref<8x32xf32, #tpu.memory_space<vmem>>, vector<8x8xf32>
    tpu.vector_store %arg9[%c0_35, %c8], %99 {strides = array<i32>} : memref<8x32xf32, #tpu.memory_space<vmem>>, vector<8x8xf32>,
    %101 = vector.extract_strided_slice %50 {offsets = [0, 16], sizes = [8, 8], strides = [1, 1]} : vector<8x32xbf16> to vector<8x8xbf16>
    %102 = vector.shape_cast %101 : vector<8x8xbf16> to vector<1x8x8xbf16>
    %103 = vector.extract_strided_slice %54 {offsets = [0, 16], sizes = [8, 8], strides = [1, 1]} : vector<8x32xbf16> to vector<8x8xbf16>
    %104 = vector.shape_cast %103 : vector<8x8xbf16> to vector<1x8x8xbf16>
    %105 = vector.extract_strided_slice %58 {offsets = [0, 16], sizes = [8, 8], strides = [1, 1]} : vector<8x32xbf16> to vector<8x8xbf16>
    %106 = vector.shape_cast %105 : vector<8x8xbf16> to vector<1x8x8xbf16>
    "tpu.trace_start"() <{level = 10 : i32, message = "bqd,bkd->bqk"}> : () -> ()
    %cst_36 = arith.constant dense<0.000000e+00> : vector<1x8x8xf32>
    %107 = tpu.matmul %102, %104, %cst_36 {dimension_numbers = #tpu.dot_dimension_numbers<[2], [2], [1], [1], [0, 0, 0, 1, 1, 1], [0], [0]>} : vector<1x8x8xbf16>, vector<1x8x8xbf16>, vector<1x8x8xf32> -> vector<1x8x8xf32>
    "tpu.trace_stop"() : () -> ()
    %cst_37 = arith.constant dense<0xFF800000> : vector<1x8xf32>
    %108 = vector.multi_reduction <maximumf>, %107, %cst_37 [2] : vector<1x8x8xf32> to vector<1x8xf32>
    %109 = vector.shape_cast %108 : vector<1x8xf32> to vector<1x8x1xf32>
    %110 = vector.broadcast %109 : vector<1x8x1xf32> to vector<1x8x8xf32>
    %111 = arith.subf %107, %110 : vector<1x8x8xf32>
    %112 = math.exp %111 : vector<1x8x8xf32>
    %cst_38 = arith.constant dense<0.000000e+00> : vector<1x8xf32>
    %113 = vector.multi_reduction <add>, %112, %cst_38 [2] : vector<1x8x8xf32> to vector<1x8xf32>
    %114 = vector.shape_cast %113 : vector<1x8xf32> to vector<1x8x1xf32>
    %115 = tpu.reciprocal %114 {approx = true} : vector<1x8x1xf32> -> vector<1x8x1xf32>
    %116 = vector.broadcast %115 : vector<1x8x1xf32> to vector<1x8x8xf32>
    %117 = arith.mulf %112, %116 : vector<1x8x8xf32>
    %118 = arith.truncf %117 : vector<1x8x8xf32> to vector<1x8x8xbf16>
    "tpu.trace_start"() <{level = 10 : i32, message = "bqk,bkd->bqd"}> : () -> ()
    %cst_39 = arith.constant dense<0.000000e+00> : vector<1x8x8xf32>
    %119 = tpu.matmul %118, %106, %cst_39 {dimension_numbers = #tpu.dot_dimension_numbers<[2], [1], [1], [2], [0, 0, 0, 1, 1, 2], [0], [0]>} : vector<1x8x8xbf16>, vector<1x8x8xbf16>, vector<1x8x8xf32> -> vector<1x8x8xf32>
    "tpu.trace_stop"() : () -> ()
    %120 = vector.shape_cast %119 : vector<1x8x8xf32> to vector<8x8xf32>
    %c0_40 = arith.constant 0 : index
    %c16 = arith.constant 16 : index
    %121 = vector.load %arg9[%c0_40, %c16] : memref<8x32xf32, #tpu.memory_space<vmem>>, vector<8x8xf32>
    tpu.vector_store %arg9[%c0_40, %c16], %120 {strides = array<i32>} : memref<8x32xf32, #tpu.memory_space<vmem>>, vector<8x8xf32>,
    %122 = vector.extract_strided_slice %50 {offsets = [0, 24], sizes = [8, 8], strides = [1, 1]} : vector<8x32xbf16> to vector<8x8xbf16>
    %123 = vector.shape_cast %122 : vector<8x8xbf16> to vector<1x8x8xbf16>
    %124 = vector.extract_strided_slice %54 {offsets = [0, 24], sizes = [8, 8], strides = [1, 1]} : vector<8x32xbf16> to vector<8x8xbf16>
    %125 = vector.shape_cast %124 : vector<8x8xbf16> to vector<1x8x8xbf16>
    %126 = vector.extract_strided_slice %58 {offsets = [0, 24], sizes = [8, 8], strides = [1, 1]} : vector<8x32xbf16> to vector<8x8xbf16>
    %127 = vector.shape_cast %126 : vector<8x8xbf16> to vector<1x8x8xbf16>
    "tpu.trace_start"() <{level = 10 : i32, message = "bqd,bkd->bqk"}> : () -> ()
    %cst_41 = arith.constant dense<0.000000e+00> : vector<1x8x8xf32>
    %128 = tpu.matmul %123, %125, %cst_41 {dimension_numbers = #tpu.dot_dimension_numbers<[2], [2], [1], [1], [0, 0, 0, 1, 1, 1], [0], [0]>} : vector<1x8x8xbf16>, vector<1x8x8xbf16>, vector<1x8x8xf32> -> vector<1x8x8xf32>
    "tpu.trace_stop"() : () -> ()
    %cst_42 = arith.constant dense<0xFF800000> : vector<1x8xf32>
    %129 = vector.multi_reduction <maximumf>, %128, %cst_42 [2] : vector<1x8x8xf32> to vector<1x8xf32>
    %130 = vector.shape_cast %129 : vector<1x8xf32> to vector<1x8x1xf32>
    %131 = vector.broadcast %130 : vector<1x8x1xf32> to vector<1x8x8xf32>
    %132 = arith.subf %128, %131 : vector<1x8x8xf32>
    %133 = math.exp %132 : vector<1x8x8xf32>
    %cst_43 = arith.constant dense<0.000000e+00> : vector<1x8xf32>
    %134 = vector.multi_reduction <add>, %133, %cst_43 [2] : vector<1x8x8xf32> to vector<1x8xf32>
    %135 = vector.shape_cast %134 : vector<1x8xf32> to vector<1x8x1xf32>
    %136 = tpu.reciprocal %135 {approx = true} : vector<1x8x1xf32> -> vector<1x8x1xf32>
    %137 = vector.broadcast %136 : vector<1x8x1xf32> to vector<1x8x8xf32>
    %138 = arith.mulf %133, %137 : vector<1x8x8xf32>
    %139 = arith.truncf %138 : vector<1x8x8xf32> to vector<1x8x8xbf16>
    "tpu.trace_start"() <{level = 10 : i32, message = "bqk,bkd->bqd"}> : () -> ()
    %cst_44 = arith.constant dense<0.000000e+00> : vector<1x8x8xf32>
    %140 = tpu.matmul %139, %127, %cst_44 {dimension_numbers = #tpu.dot_dimension_numbers<[2], [1], [1], [2], [0, 0, 0, 1, 1, 2], [0], [0]>} : vector<1x8x8xbf16>, vector<1x8x8xbf16>, vector<1x8x8xf32> -> vector<1x8x8xf32>
    "tpu.trace_stop"() : () -> ()
    %141 = vector.shape_cast %140 : vector<1x8x8xf32> to vector<8x8xf32>
    %c0_45 = arith.constant 0 : index
    %c24 = arith.constant 24 : index
    %142 = vector.load %arg9[%c0_45, %c24] : memref<8x32xf32, #tpu.memory_space<vmem>>, vector<8x8xf32>
    tpu.vector_store %arg9[%c0_45, %c24], %141 {strides = array<i32>} : memref<8x32xf32, #tpu.memory_space<vmem>>, vector<8x8xf32>,
    %c0_46 = arith.constant 0 : index
    %c0_47 = arith.constant 0 : index
    %143 = vector.load %arg9[%c0_46, %c0_47] : memref<8x32xf32, #tpu.memory_space<vmem>>, vector<8x32xf32>
    %144 = arith.truncf %143 : vector<8x32xf32> to vector<8x32xbf16>
    %cst_48 = arith.constant dense<0.000000e+00> : vector<8x32xf32>
    %145 = tpu.matmul %144, %18, %cst_48 {dimension_numbers = #tpu.dot_dimension_numbers<[1], [0], [0], [1], [0, 0, 1, 1], [], []>} : vector<8x32xbf16>, vector<32x32xbf16>, vector<8x32xf32> -> vector<8x32xf32>
    %146 = vector.broadcast %9 : vector<1x32xf32> to vector<8x32xf32>
    %147 = arith.addf %145, %146 : vector<8x32xf32>
    %148 = arith.addf %1, %147 : vector<8x32xf32>
    %cst_49 = arith.constant dense<0.000000e+00> : vector<8xf32>
    %149 = vector.multi_reduction <add>, %148, %cst_49 [1] : vector<8x32xf32> to vector<8xf32>
    %150 = vector.shape_cast %149 : vector<8xf32> to vector<8x1xf32>
    %cst_50 = arith.constant 3.200000e+01 : f32
    %151 = vector.broadcast %cst_50 : f32 to vector<8x1xf32>
    %152 = arith.divf %150, %151 : vector<8x1xf32>
    %153 = vector.broadcast %152 : vector<8x1xf32> to vector<8x32xf32>
    %154 = arith.subf %148, %153 : vector<8x32xf32>
    %155 = arith.mulf %154, %154 : vector<8x32xf32>
    %cst_51 = arith.constant dense<0.000000e+00> : vector<8xf32>
    %156 = vector.multi_reduction <add>, %155, %cst_51 [1] : vector<8x32xf32> to vector<8xf32>
    %157 = vector.shape_cast %156 : vector<8xf32> to vector<8x1xf32>
    %cst_52 = arith.constant 3.200000e+01 : f32
    %158 = vector.broadcast %cst_52 : f32 to vector<8x1xf32>
    %159 = arith.divf %157, %158 : vector<8x1xf32>
    %160 = vector.broadcast %152 : vector<8x1xf32> to vector<8x32xf32>
    %161 = arith.subf %148, %160 : vector<8x32xf32>
    %cst_53 = arith.constant 9.99999974E-6 : f32
    %162 = vector.broadcast %cst_53 : f32 to vector<8x1xf32>
    %163 = arith.addf %159, %162 : vector<8x1xf32>
    %164 = math.rsqrt %163 : vector<8x1xf32>
    %165 = vector.broadcast %164 : vector<8x1xf32> to vector<8x32xf32>
    %166 = arith.mulf %161, %165 : vector<8x32xf32>
    %167 = vector.broadcast %10 : vector<1x32xf32> to vector<8x32xf32>
    %168 = arith.mulf %166, %167 : vector<8x32xf32>
    %169 = vector.broadcast %11 : vector<1x32xf32> to vector<8x32xf32>
    %170 = arith.addf %168, %169 : vector<8x32xf32>
    %171 = arith.truncf %170 : vector<8x32xf32> to vector<8x32xbf16>
    %cst_54 = arith.constant 0.000000e+00 : f32
    %172 = vector.broadcast %cst_54 : f32 to vector<8x32xf32>
    %cst_55 = arith.constant dense<0.000000e+00> : vector<8x64xf32>
    %173 = tpu.matmul %171, %20, %cst_55 {dimension_numbers = #tpu.dot_dimension_numbers<[1], [0], [0], [1], [0, 0, 1, 1], [], []>} : vector<8x32xbf16>, vector<32x64xbf16>, vector<8x64xf32> -> vector<8x64xf32>
    %174 = vector.broadcast %14 : vector<1x64xf32> to vector<8x64xf32>
    %175 = arith.addf %173, %174 : vector<8x64xf32>
    %176 = arith.mulf %175, %175 : vector<8x64xf32>
    %177 = arith.mulf %175, %176 : vector<8x64xf32>
    %cst_56 = arith.constant 4.471500e-02 : f32
    %178 = vector.broadcast %cst_56 : f32 to vector<8x64xf32>
    %179 = arith.mulf %178, %177 : vector<8x64xf32>
    %180 = arith.addf %175, %179 : vector<8x64xf32>
    %cst_57 = arith.constant 0.797884583 : f32
    %181 = vector.broadcast %cst_57 : f32 to vector<8x64xf32>
    %182 = arith.mulf %181, %180 : vector<8x64xf32>
    %183 = math.tanh %182 : vector<8x64xf32>
    %cst_58 = arith.constant 1.000000e+00 : f32
    %184 = vector.broadcast %cst_58 : f32 to vector<8x64xf32>
    %185 = arith.addf %184, %183 : vector<8x64xf32>
    %cst_59 = arith.constant 5.000000e-01 : f32
    %186 = vector.broadcast %cst_59 : f32 to vector<8x64xf32>
    %187 = arith.mulf %186, %185 : vector<8x64xf32>
    %188 = arith.mulf %175, %187 : vector<8x64xf32>
    %189 = arith.truncf %188 : vector<8x64xf32> to vector<8x64xbf16>
    %cst_60 = arith.constant dense<0.000000e+00> : vector<8x32xf32>
    %190 = tpu.matmul %189, %22, %cst_60 {dimension_numbers = #tpu.dot_dimension_numbers<[1], [0], [0], [1], [0, 0, 1, 1], [], []>} : vector<8x64xbf16>, vector<64x32xbf16>, vector<8x32xf32> -> vector<8x32xf32>
    %191 = arith.addf %172, %190 : vector<8x32xf32>
    %192 = arith.addf %148, %191 : vector<8x32xf32>
    %193 = vector.broadcast %12 : vector<1x32xf32> to vector<8x32xf32>
    %194 = arith.addf %192, %193 : vector<8x32xf32>
    %c1 = arith.constant 1 : index
    %c0_61 = arith.constant 0 : index
    %c0_62 = arith.constant 0 : index
    %195 = vector.load %arg2[%c1, %c0_61, %c0_62] : memref<2x9x32xf32, #tpu.memory_space<vmem>>, vector<1x9x32xf32>
    %196 = vector.shape_cast %195 : vector<1x9x32xf32> to vector<9x32xf32>
    %197 = vector.extract_strided_slice %196 {offsets = [0, 0], sizes = [1, 32], strides = [1, 1]} : vector<9x32xf32> to vector<1x32xf32>
    %198 = vector.extract_strided_slice %196 {offsets = [1, 0], sizes = [1, 32], strides = [1, 1]} : vector<9x32xf32> to vector<1x32xf32>
    %199 = vector.extract_strided_slice %196 {offsets = [2, 0], sizes = [1, 32], strides = [1, 1]} : vector<9x32xf32> to vector<1x32xf32>
    %200 = vector.extract_strided_slice %196 {offsets = [3, 0], sizes = [1, 32], strides = [1, 1]} : vector<9x32xf32> to vector<1x32xf32>
    %201 = vector.extract_strided_slice %196 {offsets = [4, 0], sizes = [1, 32], strides = [1, 1]} : vector<9x32xf32> to vector<1x32xf32>
    %202 = vector.extract_strided_slice %196 {offsets = [5, 0], sizes = [1, 32], strides = [1, 1]} : vector<9x32xf32> to vector<1x32xf32>
    %203 = vector.extract_strided_slice %196 {offsets = [6, 0], sizes = [1, 32], strides = [1, 1]} : vector<9x32xf32> to vector<1x32xf32>
    %204 = vector.extract_strided_slice %196 {offsets = [7, 0], sizes = [1, 32], strides = [1, 1]} : vector<9x32xf32> to vector<1x32xf32>
    %205 = vector.extract_strided_slice %196 {offsets = [8, 0], sizes = [1, 32], strides = [1, 1]} : vector<9x32xf32> to vector<1x32xf32>
    %c1_63 = arith.constant 1 : index
    %c0_64 = arith.constant 0 : index
    %c0_65 = arith.constant 0 : index
    %206 = vector.load %arg3[%c1_63, %c0_64, %c0_65] : memref<2x1x64xf32, #tpu.memory_space<vmem>>, vector<1x1x64xf32>
    %207 = vector.shape_cast %206 : vector<1x1x64xf32> to vector<1x64xf32>
    %c1_66 = arith.constant 1 : index
    %c0_67 = arith.constant 0 : index
    %c0_68 = arith.constant 0 : index
    %208 = vector.load %arg4[%c1_66, %c0_67, %c0_68] : memref<2x32x96xbf16, #tpu.memory_space<vmem>>, vector<1x32x96xbf16>
    %209 = vector.shape_cast %208 : vector<1x32x96xbf16> to vector<32x96xbf16>
    %c1_69 = arith.constant 1 : index
    %c0_70 = arith.constant 0 : index
    %c0_71 = arith.constant 0 : index
    %210 = vector.load %arg5[%c1_69, %c0_70, %c0_71] : memref<2x32x32xbf16, #tpu.memory_space<vmem>>, vector<1x32x32xbf16>
    %211 = vector.shape_cast %210 : vector<1x32x32xbf16> to vector<32x32xbf16>
    %c1_72 = arith.constant 1 : index
    %c0_73 = arith.constant 0 : index
    %c0_74 = arith.constant 0 : index
    %212 = vector.load %arg6[%c1_72, %c0_73, %c0_74] : memref<2x32x64xbf16, #tpu.memory_space<vmem>>, vector<1x32x64xbf16>
    %213 = vector.shape_cast %212 : vector<1x32x64xbf16> to vector<32x64xbf16>
    %c1_75 = arith.constant 1 : index
    %c0_76 = arith.constant 0 : index
    %c0_77 = arith.constant 0 : index
    %214 = vector.load %arg7[%c1_75, %c0_76, %c0_77] : memref<2x64x32xbf16, #tpu.memory_space<vmem>>, vector<1x64x32xbf16>
    %215 = vector.shape_cast %214 : vector<1x64x32xbf16> to vector<64x32xbf16>
    %cst_78 = arith.constant dense<0.000000e+00> : vector<8xf32>
    %216 = vector.multi_reduction <add>, %194, %cst_78 [1] : vector<8x32xf32> to vector<8xf32>
    %217 = vector.shape_cast %216 : vector<8xf32> to vector<8x1xf32>
    %cst_79 = arith.constant 3.200000e+01 : f32
    %218 = vector.broadcast %cst_79 : f32 to vector<8x1xf32>
    %219 = arith.divf %217, %218 : vector<8x1xf32>
    %220 = vector.broadcast %219 : vector<8x1xf32> to vector<8x32xf32>
    %221 = arith.subf %194, %220 : vector<8x32xf32>
    %222 = arith.mulf %221, %221 : vector<8x32xf32>
    %cst_80 = arith.constant dense<0.000000e+00> : vector<8xf32>
    %223 = vector.multi_reduction <add>, %222, %cst_80 [1] : vector<8x32xf32> to vector<8xf32>
    %224 = vector.shape_cast %223 : vector<8xf32> to vector<8x1xf32>
    %cst_81 = arith.constant 3.200000e+01 : f32
    %225 = vector.broadcast %cst_81 : f32 to vector<8x1xf32>
    %226 = arith.divf %224, %225 : vector<8x1xf32>
    %227 = vector.broadcast %219 : vector<8x1xf32> to vector<8x32xf32>
    %228 = arith.subf %194, %227 : vector<8x32xf32>
    %cst_82 = arith.constant 9.99999974E-6 : f32
    %229 = vector.broadcast %cst_82 : f32 to vector<8x1xf32>
    %230 = arith.addf %226, %229 : vector<8x1xf32>
    %231 = math.rsqrt %230 : vector<8x1xf32>
    %232 = vector.broadcast %231 : vector<8x1xf32> to vector<8x32xf32>
    %233 = arith.mulf %228, %232 : vector<8x32xf32>
    %234 = vector.broadcast %197 : vector<1x32xf32> to vector<8x32xf32>
    %235 = arith.mulf %233, %234 : vector<8x32xf32>
    %236 = vector.broadcast %198 : vector<1x32xf32> to vector<8x32xf32>
    %237 = arith.addf %235, %236 : vector<8x32xf32>
    %238 = arith.truncf %237 : vector<8x32xf32> to vector<8x32xbf16>
    %cst_83 = arith.constant dense<0.000000e+00> : vector<8x96xf32>
    %239 = tpu.matmul %238, %209, %cst_83 {dimension_numbers = #tpu.dot_dimension_numbers<[1], [0], [0], [1], [0, 0, 1, 1], [], []>} : vector<8x32xbf16>, vector<32x96xbf16>, vector<8x96xf32> -> vector<8x96xf32>
    %240 = vector.extract_strided_slice %239 {offsets = [0, 0], sizes = [8, 32], strides = [1, 1]} : vector<8x96xf32> to vector<8x32xf32>
    %241 = vector.broadcast %199 : vector<1x32xf32> to vector<8x32xf32>
    %242 = arith.addf %240, %241 : vector<8x32xf32>
    %243 = arith.truncf %242 : vector<8x32xf32> to vector<8x32xbf16>
    %244 = vector.extract_strided_slice %239 {offsets = [0, 32], sizes = [8, 32], strides = [1, 1]} : vector<8x96xf32> to vector<8x32xf32>
    %245 = vector.broadcast %200 : vector<1x32xf32> to vector<8x32xf32>
    %246 = arith.addf %244, %245 : vector<8x32xf32>
    %247 = arith.truncf %246 : vector<8x32xf32> to vector<8x32xbf16>
    %248 = vector.extract_strided_slice %239 {offsets = [0, 64], sizes = [8, 32], strides = [1, 1]} : vector<8x96xf32> to vector<8x32xf32>
    %249 = vector.broadcast %201 : vector<1x32xf32> to vector<8x32xf32>
    %250 = arith.addf %248, %249 : vector<8x32xf32>
    %251 = arith.truncf %250 : vector<8x32xf32> to vector<8x32xbf16>
    %252 = vector.extract_strided_slice %243 {offsets = [0, 0], sizes = [8, 8], strides = [1, 1]} : vector<8x32xbf16> to vector<8x8xbf16>
    %253 = vector.shape_cast %252 : vector<8x8xbf16> to vector<1x8x8xbf16>
    %254 = vector.extract_strided_slice %247 {offsets = [0, 0], sizes = [8, 8], strides = [1, 1]} : vector<8x32xbf16> to vector<8x8xbf16>
    %255 = vector.shape_cast %254 : vector<8x8xbf16> to vector<1x8x8xbf16>
    %256 = vector.extract_strided_slice %251 {offsets = [0, 0], sizes = [8, 8], strides = [1, 1]} : vector<8x32xbf16> to vector<8x8xbf16>
    %257 = vector.shape_cast %256 : vector<8x8xbf16> to vector<1x8x8xbf16>
    "tpu.trace_start"() <{level = 10 : i32, message = "bqd,bkd->bqk"}> : () -> ()
    %cst_84 = arith.constant dense<0.000000e+00> : vector<1x8x8xf32>
    %258 = tpu.matmul %253, %255, %cst_84 {dimension_numbers = #tpu.dot_dimension_numbers<[2], [2], [1], [1], [0, 0, 0, 1, 1, 1], [0], [0]>} : vector<1x8x8xbf16>, vector<1x8x8xbf16>, vector<1x8x8xf32> -> vector<1x8x8xf32>
    "tpu.trace_stop"() : () -> ()
    %cst_85 = arith.constant dense<0xFF800000> : vector<1x8xf32>
    %259 = vector.multi_reduction <maximumf>, %258, %cst_85 [2] : vector<1x8x8xf32> to vector<1x8xf32>
    %260 = vector.shape_cast %259 : vector<1x8xf32> to vector<1x8x1xf32>
    %261 = vector.broadcast %260 : vector<1x8x1xf32> to vector<1x8x8xf32>
    %262 = arith.subf %258, %261 : vector<1x8x8xf32>
    %263 = math.exp %262 : vector<1x8x8xf32>
    %cst_86 = arith.constant dense<0.000000e+00> : vector<1x8xf32>
    %264 = vector.multi_reduction <add>, %263, %cst_86 [2] : vector<1x8x8xf32> to vector<1x8xf32>
    %265 = vector.shape_cast %264 : vector<1x8xf32> to vector<1x8x1xf32>
    %266 = tpu.reciprocal %265 {approx = true} : vector<1x8x1xf32> -> vector<1x8x1xf32>
    %267 = vector.broadcast %266 : vector<1x8x1xf32> to vector<1x8x8xf32>
    %268 = arith.mulf %263, %267 : vector<1x8x8xf32>
    %269 = arith.truncf %268 : vector<1x8x8xf32> to vector<1x8x8xbf16>
    "tpu.trace_start"() <{level = 10 : i32, message = "bqk,bkd->bqd"}> : () -> ()
    %cst_87 = arith.constant dense<0.000000e+00> : vector<1x8x8xf32>
    %270 = tpu.matmul %269, %257, %cst_87 {dimension_numbers = #tpu.dot_dimension_numbers<[2], [1], [1], [2], [0, 0, 0, 1, 1, 2], [0], [0]>} : vector<1x8x8xbf16>, vector<1x8x8xbf16>, vector<1x8x8xf32> -> vector<1x8x8xf32>
    "tpu.trace_stop"() : () -> ()
    %271 = vector.shape_cast %270 : vector<1x8x8xf32> to vector<8x8xf32>
    %c0_88 = arith.constant 0 : index
    %c0_89 = arith.constant 0 : index
    %272 = vector.load %arg9[%c0_88, %c0_89] : memref<8x32xf32, #tpu.memory_space<vmem>>, vector<8x8xf32>
    tpu.vector_store %arg9[%c0_88, %c0_89], %271 {strides = array<i32>} : memref<8x32xf32, #tpu.memory_space<vmem>>, vector<8x8xf32>,
    %273 = vector.extract_strided_slice %243 {offsets = [0, 8], sizes = [8, 8], strides = [1, 1]} : vector<8x32xbf16> to vector<8x8xbf16>
    %274 = vector.shape_cast %273 : vector<8x8xbf16> to vector<1x8x8xbf16>
    %275 = vector.extract_strided_slice %247 {offsets = [0, 8], sizes = [8, 8], strides = [1, 1]} : vector<8x32xbf16> to vector<8x8xbf16>
    %276 = vector.shape_cast %275 : vector<8x8xbf16> to vector<1x8x8xbf16>
    %277 = vector.extract_strided_slice %251 {offsets = [0, 8], sizes = [8, 8], strides = [1, 1]} : vector<8x32xbf16> to vector<8x8xbf16>
    %278 = vector.shape_cast %277 : vector<8x8xbf16> to vector<1x8x8xbf16>
    "tpu.trace_start"() <{level = 10 : i32, message = "bqd,bkd->bqk"}> : () -> ()
    %cst_90 = arith.constant dense<0.000000e+00> : vector<1x8x8xf32>
    %279 = tpu.matmul %274, %276, %cst_90 {dimension_numbers = #tpu.dot_dimension_numbers<[2], [2], [1], [1], [0, 0, 0, 1, 1, 1], [0], [0]>} : vector<1x8x8xbf16>, vector<1x8x8xbf16>, vector<1x8x8xf32> -> vector<1x8x8xf32>
    "tpu.trace_stop"() : () -> ()
    %cst_91 = arith.constant dense<0xFF800000> : vector<1x8xf32>
    %280 = vector.multi_reduction <maximumf>, %279, %cst_91 [2] : vector<1x8x8xf32> to vector<1x8xf32>
    %281 = vector.shape_cast %280 : vector<1x8xf32> to vector<1x8x1xf32>
    %282 = vector.broadcast %281 : vector<1x8x1xf32> to vector<1x8x8xf32>
    %283 = arith.subf %279, %282 : vector<1x8x8xf32>
    %284 = math.exp %283 : vector<1x8x8xf32>
    %cst_92 = arith.constant dense<0.000000e+00> : vector<1x8xf32>
    %285 = vector.multi_reduction <add>, %284, %cst_92 [2] : vector<1x8x8xf32> to vector<1x8xf32>
    %286 = vector.shape_cast %285 : vector<1x8xf32> to vector<1x8x1xf32>
    %287 = tpu.reciprocal %286 {approx = true} : vector<1x8x1xf32> -> vector<1x8x1xf32>
    %288 = vector.broadcast %287 : vector<1x8x1xf32> to vector<1x8x8xf32>
    %289 = arith.mulf %284, %288 : vector<1x8x8xf32>
    %290 = arith.truncf %289 : vector<1x8x8xf32> to vector<1x8x8xbf16>
    "tpu.trace_start"() <{level = 10 : i32, message = "bqk,bkd->bqd"}> : () -> ()
    %cst_93 = arith.constant dense<0.000000e+00> : vector<1x8x8xf32>
    %291 = tpu.matmul %290, %278, %cst_93 {dimension_numbers = #tpu.dot_dimension_numbers<[2], [1], [1], [2], [0, 0, 0, 1, 1, 2], [0], [0]>} : vector<1x8x8xbf16>, vector<1x8x8xbf16>, vector<1x8x8xf32> -> vector<1x8x8xf32>
    "tpu.trace_stop"() : () -> ()
    %292 = vector.shape_cast %291 : vector<1x8x8xf32> to vector<8x8xf32>
    %c0_94 = arith.constant 0 : index
    %c8_95 = arith.constant 8 : index
    %293 = vector.load %arg9[%c0_94, %c8_95] : memref<8x32xf32, #tpu.memory_space<vmem>>, vector<8x8xf32>
    tpu.vector_store %arg9[%c0_94, %c8_95], %292 {strides = array<i32>} : memref<8x32xf32, #tpu.memory_space<vmem>>, vector<8x8xf32>,
    %294 = vector.extract_strided_slice %243 {offsets = [0, 16], sizes = [8, 8], strides = [1, 1]} : vector<8x32xbf16> to vector<8x8xbf16>
    %295 = vector.shape_cast %294 : vector<8x8xbf16> to vector<1x8x8xbf16>
    %296 = vector.extract_strided_slice %247 {offsets = [0, 16], sizes = [8, 8], strides = [1, 1]} : vector<8x32xbf16> to vector<8x8xbf16>
    %297 = vector.shape_cast %296 : vector<8x8xbf16> to vector<1x8x8xbf16>
    %298 = vector.extract_strided_slice %251 {offsets = [0, 16], sizes = [8, 8], strides = [1, 1]} : vector<8x32xbf16> to vector<8x8xbf16>
    %299 = vector.shape_cast %298 : vector<8x8xbf16> to vector<1x8x8xbf16>
    "tpu.trace_start"() <{level = 10 : i32, message = "bqd,bkd->bqk"}> : () -> ()
    %cst_96 = arith.constant dense<0.000000e+00> : vector<1x8x8xf32>
    %300 = tpu.matmul %295, %297, %cst_96 {dimension_numbers = #tpu.dot_dimension_numbers<[2], [2], [1], [1], [0, 0, 0, 1, 1, 1], [0], [0]>} : vector<1x8x8xbf16>, vector<1x8x8xbf16>, vector<1x8x8xf32> -> vector<1x8x8xf32>
    "tpu.trace_stop"() : () -> ()
    %cst_97 = arith.constant dense<0xFF800000> : vector<1x8xf32>
    %301 = vector.multi_reduction <maximumf>, %300, %cst_97 [2] : vector<1x8x8xf32> to vector<1x8xf32>
    %302 = vector.shape_cast %301 : vector<1x8xf32> to vector<1x8x1xf32>
    %303 = vector.broadcast %302 : vector<1x8x1xf32> to vector<1x8x8xf32>
    %304 = arith.subf %300, %303 : vector<1x8x8xf32>
    %305 = math.exp %304 : vector<1x8x8xf32>
    %cst_98 = arith.constant dense<0.000000e+00> : vector<1x8xf32>
    %306 = vector.multi_reduction <add>, %305, %cst_98 [2] : vector<1x8x8xf32> to vector<1x8xf32>
    %307 = vector.shape_cast %306 : vector<1x8xf32> to vector<1x8x1xf32>
    %308 = tpu.reciprocal %307 {approx = true} : vector<1x8x1xf32> -> vector<1x8x1xf32>
    %309 = vector.broadcast %308 : vector<1x8x1xf32> to vector<1x8x8xf32>
    %310 = arith.mulf %305, %309 : vector<1x8x8xf32>
    %311 = arith.truncf %310 : vector<1x8x8xf32> to vector<1x8x8xbf16>
    "tpu.trace_start"() <{level = 10 : i32, message = "bqk,bkd->bqd"}> : () -> ()
    %cst_99 = arith.constant dense<0.000000e+00> : vector<1x8x8xf32>
    %312 = tpu.matmul %311, %299, %cst_99 {dimension_numbers = #tpu.dot_dimension_numbers<[2], [1], [1], [2], [0, 0, 0, 1, 1, 2], [0], [0]>} : vector<1x8x8xbf16>, vector<1x8x8xbf16>, vector<1x8x8xf32> -> vector<1x8x8xf32>
    "tpu.trace_stop"() : () -> ()
    %313 = vector.shape_cast %312 : vector<1x8x8xf32> to vector<8x8xf32>
    %c0_100 = arith.constant 0 : index
    %c16_101 = arith.constant 16 : index
    %314 = vector.load %arg9[%c0_100, %c16_101] : memref<8x32xf32, #tpu.memory_space<vmem>>, vector<8x8xf32>
    tpu.vector_store %arg9[%c0_100, %c16_101], %313 {strides = array<i32>} : memref<8x32xf32, #tpu.memory_space<vmem>>, vector<8x8xf32>,
    %315 = vector.extract_strided_slice %243 {offsets = [0, 24], sizes = [8, 8], strides = [1, 1]} : vector<8x32xbf16> to vector<8x8xbf16>
    %316 = vector.shape_cast %315 : vector<8x8xbf16> to vector<1x8x8xbf16>
    %317 = vector.extract_strided_slice %247 {offsets = [0, 24], sizes = [8, 8], strides = [1, 1]} : vector<8x32xbf16> to vector<8x8xbf16>
    %318 = vector.shape_cast %317 : vector<8x8xbf16> to vector<1x8x8xbf16>
    %319 = vector.extract_strided_slice %251 {offsets = [0, 24], sizes = [8, 8], strides = [1, 1]} : vector<8x32xbf16> to vector<8x8xbf16>
    %320 = vector.shape_cast %319 : vector<8x8xbf16> to vector<1x8x8xbf16>
    "tpu.trace_start"() <{level = 10 : i32, message = "bqd,bkd->bqk"}> : () -> ()
    %cst_102 = arith.constant dense<0.000000e+00> : vector<1x8x8xf32>
    %321 = tpu.matmul %316, %318, %cst_102 {dimension_numbers = #tpu.dot_dimension_numbers<[2], [2], [1], [1], [0, 0, 0, 1, 1, 1], [0], [0]>} : vector<1x8x8xbf16>, vector<1x8x8xbf16>, vector<1x8x8xf32> -> vector<1x8x8xf32>
    "tpu.trace_stop"() : () -> ()
    %cst_103 = arith.constant dense<0xFF800000> : vector<1x8xf32>
    %322 = vector.multi_reduction <maximumf>, %321, %cst_103 [2] : vector<1x8x8xf32> to vector<1x8xf32>
    %323 = vector.shape_cast %322 : vector<1x8xf32> to vector<1x8x1xf32>
    %324 = vector.broadcast %323 : vector<1x8x1xf32> to vector<1x8x8xf32>
    %325 = arith.subf %321, %324 : vector<1x8x8xf32>
    %326 = math.exp %325 : vector<1x8x8xf32>
    %cst_104 = arith.constant dense<0.000000e+00> : vector<1x8xf32>
    %327 = vector.multi_reduction <add>, %326, %cst_104 [2] : vector<1x8x8xf32> to vector<1x8xf32>
    %328 = vector.shape_cast %327 : vector<1x8xf32> to vector<1x8x1xf32>
    %329 = tpu.reciprocal %328 {approx = true} : vector<1x8x1xf32> -> vector<1x8x1xf32>
    %330 = vector.broadcast %329 : vector<1x8x1xf32> to vector<1x8x8xf32>
    %331 = arith.mulf %326, %330 : vector<1x8x8xf32>
    %332 = arith.truncf %331 : vector<1x8x8xf32> to vector<1x8x8xbf16>
    "tpu.trace_start"() <{level = 10 : i32, message = "bqk,bkd->bqd"}> : () -> ()
    %cst_105 = arith.constant dense<0.000000e+00> : vector<1x8x8xf32>
    %333 = tpu.matmul %332, %320, %cst_105 {dimension_numbers = #tpu.dot_dimension_numbers<[2], [1], [1], [2], [0, 0, 0, 1, 1, 2], [0], [0]>} : vector<1x8x8xbf16>, vector<1x8x8xbf16>, vector<1x8x8xf32> -> vector<1x8x8xf32>
    "tpu.trace_stop"() : () -> ()
    %334 = vector.shape_cast %333 : vector<1x8x8xf32> to vector<8x8xf32>
    %c0_106 = arith.constant 0 : index
    %c24_107 = arith.constant 24 : index
    %335 = vector.load %arg9[%c0_106, %c24_107] : memref<8x32xf32, #tpu.memory_space<vmem>>, vector<8x8xf32>
    tpu.vector_store %arg9[%c0_106, %c24_107], %334 {strides = array<i32>} : memref<8x32xf32, #tpu.memory_space<vmem>>, vector<8x8xf32>,
    %c0_108 = arith.constant 0 : index
    %c0_109 = arith.constant 0 : index
    %336 = vector.load %arg9[%c0_108, %c0_109] : memref<8x32xf32, #tpu.memory_space<vmem>>, vector<8x32xf32>
    %337 = arith.truncf %336 : vector<8x32xf32> to vector<8x32xbf16>
    %cst_110 = arith.constant dense<0.000000e+00> : vector<8x32xf32>
    %338 = tpu.matmul %337, %211, %cst_110 {dimension_numbers = #tpu.dot_dimension_numbers<[1], [0], [0], [1], [0, 0, 1, 1], [], []>} : vector<8x32xbf16>, vector<32x32xbf16>, vector<8x32xf32> -> vector<8x32xf32>
    %339 = vector.broadcast %202 : vector<1x32xf32> to vector<8x32xf32>
    %340 = arith.addf %338, %339 : vector<8x32xf32>
    %341 = arith.addf %194, %340 : vector<8x32xf32>
    %cst_111 = arith.constant dense<0.000000e+00> : vector<8xf32>
    %342 = vector.multi_reduction <add>, %341, %cst_111 [1] : vector<8x32xf32> to vector<8xf32>
    %343 = vector.shape_cast %342 : vector<8xf32> to vector<8x1xf32>
    %cst_112 = arith.constant 3.200000e+01 : f32
    %344 = vector.broadcast %cst_112 : f32 to vector<8x1xf32>
    %345 = arith.divf %343, %344 : vector<8x1xf32>
    %346 = vector.broadcast %345 : vector<8x1xf32> to vector<8x32xf32>
    %347 = arith.subf %341, %346 : vector<8x32xf32>
    %348 = arith.mulf %347, %347 : vector<8x32xf32>
    %cst_113 = arith.constant dense<0.000000e+00> : vector<8xf32>
    %349 = vector.multi_reduction <add>, %348, %cst_113 [1] : vector<8x32xf32> to vector<8xf32>
    %350 = vector.shape_cast %349 : vector<8xf32> to vector<8x1xf32>
    %cst_114 = arith.constant 3.200000e+01 : f32
    %351 = vector.broadcast %cst_114 : f32 to vector<8x1xf32>
    %352 = arith.divf %350, %351 : vector<8x1xf32>
    %353 = vector.broadcast %345 : vector<8x1xf32> to vector<8x32xf32>
    %354 = arith.subf %341, %353 : vector<8x32xf32>
    %cst_115 = arith.constant 9.99999974E-6 : f32
    %355 = vector.broadcast %cst_115 : f32 to vector<8x1xf32>
    %356 = arith.addf %352, %355 : vector<8x1xf32>
    %357 = math.rsqrt %356 : vector<8x1xf32>
    %358 = vector.broadcast %357 : vector<8x1xf32> to vector<8x32xf32>
    %359 = arith.mulf %354, %358 : vector<8x32xf32>
    %360 = vector.broadcast %203 : vector<1x32xf32> to vector<8x32xf32>
    %361 = arith.mulf %359, %360 : vector<8x32xf32>
    %362 = vector.broadcast %204 : vector<1x32xf32> to vector<8x32xf32>
    %363 = arith.addf %361, %362 : vector<8x32xf32>
    %364 = arith.truncf %363 : vector<8x32xf32> to vector<8x32xbf16>
    %cst_116 = arith.constant 0.000000e+00 : f32
    %365 = vector.broadcast %cst_116 : f32 to vector<8x32xf32>
    %cst_117 = arith.constant dense<0.000000e+00> : vector<8x64xf32>
    %366 = tpu.matmul %364, %213, %cst_117 {dimension_numbers = #tpu.dot_dimension_numbers<[1], [0], [0], [1], [0, 0, 1, 1], [], []>} : vector<8x32xbf16>, vector<32x64xbf16>, vector<8x64xf32> -> vector<8x64xf32>
    %367 = vector.broadcast %207 : vector<1x64xf32> to vector<8x64xf32>
    %368 = arith.addf %366, %367 : vector<8x64xf32>
    %369 = arith.mulf %368, %368 : vector<8x64xf32>
    %370 = arith.mulf %368, %369 : vector<8x64xf32>
    %cst_118 = arith.constant 4.471500e-02 : f32
    %371 = vector.broadcast %cst_118 : f32 to vector<8x64xf32>
    %372 = arith.mulf %371, %370 : vector<8x64xf32>
    %373 = arith.addf %368, %372 : vector<8x64xf32>
    %cst_119 = arith.constant 0.797884583 : f32
    %374 = vector.broadcast %cst_119 : f32 to vector<8x64xf32>
    %375 = arith.mulf %374, %373 : vector<8x64xf32>
    %376 = math.tanh %375 : vector<8x64xf32>
    %cst_120 = arith.constant 1.000000e+00 : f32
    %377 = vector.broadcast %cst_120 : f32 to vector<8x64xf32>
    %378 = arith.addf %377, %376 : vector<8x64xf32>
    %cst_121 = arith.constant 5.000000e-01 : f32
    %379 = vector.broadcast %cst_121 : f32 to vector<8x64xf32>
    %380 = arith.mulf %379, %378 : vector<8x64xf32>
    %381 = arith.mulf %368, %380 : vector<8x64xf32>
    %382 = arith.truncf %381 : vector<8x64xf32> to vector<8x64xbf16>
    %cst_122 = arith.constant dense<0.000000e+00> : vector<8x32xf32>
    %383 = tpu.matmul %382, %215, %cst_122 {dimension_numbers = #tpu.dot_dimension_numbers<[1], [0], [0], [1], [0, 0, 1, 1], [], []>} : vector<8x64xbf16>, vector<64x32xbf16>, vector<8x32xf32> -> vector<8x32xf32>
    %384 = arith.addf %365, %383 : vector<8x32xf32>
    %385 = arith.addf %341, %384 : vector<8x32xf32>
    %386 = vector.broadcast %205 : vector<1x32xf32> to vector<8x32xf32>
    %387 = arith.addf %385, %386 : vector<8x32xf32>
    %388 = vector.shape_cast %387 : vector<8x32xf32> to vector<1x8x32xf32>
    %c0_123 = arith.constant 0 : index
    %c0_124 = arith.constant 0 : index
    %c0_125 = arith.constant 0 : index
    %389 = vector.load %arg8[%c0_123, %c0_124, %c0_125] : memref<1x8x32xf32, #tpu.memory_space<vmem>>, vector<1x8x32xf32>
    tpu.vector_store %arg8[%c0_123, %c0_124, %c0_125], %388 {strides = array<i32>} : memref<1x8x32xf32, #tpu.memory_space<vmem>>, vector<1x8x32xf32>,
    return
  }
  func.func @transform_0(%arg0: i32) -> (i32, i32, i32) {
    %c0_i32 = arith.constant 0 : i32
    %c0_i32_0 = arith.constant 0 : i32
    %c0_i32_1 = arith.constant 0 : i32
    return %arg0, %c0_i32, %c0_i32_0 : i32, i32, i32
  }
  func.func @transform_1(%arg0: i32) -> (i32, i32, i32) {
    %c0_i32 = arith.constant 0 : i32
    %c0_i32_0 = arith.constant 0 : i32
    %c0_i32_1 = arith.constant 0 : i32
    %c0_i32_2 = arith.constant 0 : i32
    return %c0_i32, %c0_i32_0, %c0_i32_1 : i32, i32, i32
  }
  func.func @transform_2(%arg0: i32) -> (i32, i32, i32) {
    %c0_i32 = arith.constant 0 : i32
    %c0_i32_0 = arith.constant 0 : i32
    %c0_i32_1 = arith.constant 0 : i32
    %c0_i32_2 = arith.constant 0 : i32
    return %c0_i32, %c0_i32_0, %c0_i32_1 : i32, i32, i32
  }
  func.func @transform_3(%arg0: i32) -> (i32, i32, i32) {
    %c0_i32 = arith.constant 0 : i32
    %c0_i32_0 = arith.constant 0 : i32
    %c0_i32_1 = arith.constant 0 : i32
    %c0_i32_2 = arith.constant 0 : i32
    return %c0_i32, %c0_i32_0, %c0_i32_1 : i32, i32, i32
  }
  func.func @transform_4(%arg0: i32) -> (i32, i32, i32) {
    %c0_i32 = arith.constant 0 : i32
    %c0_i32_0 = arith.constant 0 : i32
    %c0_i32_1 = arith.constant 0 : i32
    %c0_i32_2 = arith.constant 0 : i32
    return %c0_i32, %c0_i32_0, %c0_i32_1 : i32, i32, i32
  }
  func.func @transform_5(%arg0: i32) -> (i32, i32, i32) {
    %c0_i32 = arith.constant 0 : i32
    %c0_i32_0 = arith.constant 0 : i32
    %c0_i32_1 = arith.constant 0 : i32
    %c0_i32_2 = arith.constant 0 : i32
    return %c0_i32, %c0_i32_0, %c0_i32_1 : i32, i32, i32
  }
  func.func @transform_6(%arg0: i32) -> (i32, i32, i32) {
    %c0_i32 = arith.constant 0 : i32
    %c0_i32_0 = arith.constant 0 : i32
    %c0_i32_1 = arith.constant 0 : i32
    %c0_i32_2 = arith.constant 0 : i32
    return %c0_i32, %c0_i32_0, %c0_i32_1 : i32, i32, i32
  }
  func.func @transform_7(%arg0: i32) -> (i32, i32, i32) {
    %c0_i32 = arith.constant 0 : i32
    %c0_i32_0 = arith.constant 0 : i32
    %c0_i32_1 = arith.constant 0 : i32
    return %arg0, %c0_i32, %c0_i32_0 : i32, i32, i32
  }
}

</mosaic_0001>

<llo_original>
// kernel: tpu_custom_call.1
$region0: #{tpu_custom_call.1}
  #allocation0 [shape = 'u32[]', space=smem, size = 0x4, offset = 0x4, fixed_abs, tag = 'smem constant byte address 0x4 - core index']
  #allocation1 [shape = 'u32[72,128]{1,0:T(1,128)}', space=vmem, size = 0x9000, scoped, tag = 'internal scratch']
  #allocation2 [shape = 'f32[8,32]{1,0:T(8,128)}', space=vmem, size = 0x1000, scoped, tag = 'scratch operand']
  %s0 = inlined_call_operand.vmem [shape: f32[2,8,32], index: 0, kind: input, shape index: {}]
  %s1 = inlined_call_operand.vmem [shape: f32[2,9,32], index: 1, kind: input, shape index: {}]
  %s2 = inlined_call_operand.vmem [shape: f32[2,1,64], index: 2, kind: input, shape index: {}]
  %s3 = inlined_call_operand.vmem [shape: bf16[2,32,96], index: 3, kind: input, shape index: {}]
  %s4 = inlined_call_operand.vmem [shape: bf16[2,32,32], index: 4, kind: input, shape index: {}]
  %s5 = inlined_call_operand.vmem [shape: bf16[2,32,64], index: 5, kind: input, shape index: {}]
  %s6 = inlined_call_operand.vmem [shape: bf16[2,64,32], index: 6, kind: input, shape index: {}]
  %s7 = inlined_call_operand.hbm [shape: f32[2,8,32], index: 7, kind: output, shape index: {}]
  %s8 = sld [smem:[#allocation0]]
  $region61: #{tpu_custom_call.1} parent=0
    _
  %s10 = ssub.s32 1, %s8
  %s11 = scalar_select 0, %s10, %s8
  $region1: #{tpu_custom_call.1} parent=0
    #allocation3 [shape = 'u8[8192]{0}', space=vmem, size = 0x2000, scoped, tag = 'output window, operand 0']
    #allocation4 [shape = 's32[2]{0}', space=sflag, size = 0x8, scoped, tag = 'scoped memory for tpu_custom_call.1']
    %12 = vsyncpa [#allocation4], 0
    %s13 = scalar_lea.sflag [#allocation4], 1
    %14 = vsyncpa %s13, 0
    loop: start=0, step=1, limit=4
    $region2: #{tpu_custom_call.1} parent=1 // loop_pre_header
      _
    $region3: #{tpu_custom_call.1} parent=1 // loop_header
      %s16 = sphi 0, %s20
      %p17 = scmp.ge.s32.totalorder %s16, 4
      %s26 = sphi 0, %s28
      %s29 = sphi 0, %s26
      %s30 = sphi 0, %s29
      %s46 = sphi 0, %s30
      %s50 = sphi 0, %s50
      %s52 = sphi 0, %s50
      %s53 = sphi 0, %s52
      %s67 = sphi 0, %s53
      %s71 = sphi 0, %s71
      %s73 = sphi 0, %s71
      %s74 = sphi 0, %s73
      %s88 = sphi 0, %s74
      %s92 = sphi 0, %s92
      %s94 = sphi 0, %s92
      %s95 = sphi 0, %s94
      %s109 = sphi 0, %s95
      %s113 = sphi 0, %s113
      %s115 = sphi 0, %s113
      %s116 = sphi 0, %s115
      %s130 = sphi 0, %s116
      %s134 = sphi 0, %s134
      %s136 = sphi 0, %s134
      %s137 = sphi 0, %s136
      %s151 = sphi 0, %s137
      %s155 = sphi 0, %s155
      %s157 = sphi 0, %s155
      %s158 = sphi 0, %s157
      %s172 = sphi 0, %s158
      %s178 = sphi 0, %s180
      %s181 = sphi 0, %s178
      %s182 = sphi 0, %s181
      %s198 = sphi 0, %s182
    $region4: #{tpu_custom_call.1} parent=1 // loop_header_branch
      %19 = sbr.rel (%p17) target = $region8
    $region5: #{tpu_custom_call.1} parent=1 // loop_body
      %s21 = ssub.s32 %s16, 1
      %s22 = ssub.s32 %s16, 2
      %s23 = sadd.s32 %s16, 1
      %s24 = ssub.s32 %s16, %s23
      %p25 = scmp.eq.s32.totalorder %s24, 0
      %s27 = sadd.s32 %s26, 1
      %s28 = scalar_select %p25, %s26, %s27
      %p31 = pneg %p25
      %p32 = scmp.eq.s32.totalorder %s16, 1
      %p33 = por %p31, %p32
      %p34 = scmp.ne.s32.totalorder %s26, %s29
      %p35 = scmp.eq.s32.totalorder %s16, 0
      %p36 = por %p34, %p35
      %p37 = scmp.ne.s32.totalorder %s26, %s29
      %p38 = scmp.eq.s32.totalorder %s21, 1
      %p39 = por %p37, %p38
      %p40 = scmp.ne.s32.totalorder %s29, %s30
      %p41 = scmp.eq.s32.totalorder %s21, 0
      %p42 = por %p40, %p41
      %p43 = scmp.ne.s32.totalorder %s29, %s30
      %p44 = scmp.eq.s32.totalorder %s22, 1
      %p45 = por %p43, %p44
      %p47 = scmp.ne.s32.totalorder %s30, %s46
      %p48 = scmp.eq.s32.totalorder %s22, 0
      %p49 = por %p47, %p48
      %s51 = sadd.s32 %s50, 1
      %p54 = scmp.eq.s32.totalorder %s16, 1
      %p55 = scmp.ne.s32.totalorder %s50, %s52
      %p56 = scmp.eq.s32.totalorder %s16, 0
      %p57 = por %p55, %p56
      %p58 = scmp.ne.s32.totalorder %s50, %s52
      %p59 = scmp.eq.s32.totalorder %s21, 1
      %p60 = por %p58, %p59
      %p61 = scmp.ne.s32.totalorder %s52, %s53
      %p62 = scmp.eq.s32.totalorder %s21, 0
      %p63 = por %p61, %p62
      %p64 = scmp.ne.s32.totalorder %s52, %s53
      %p65 = scmp.eq.s32.totalorder %s22, 1
      %p66 = por %p64, %p65
      %p68 = scmp.ne.s32.totalorder %s53, %s67
      %p69 = scmp.eq.s32.totalorder %s22, 0
      %p70 = por %p68, %p69
      %s72 = sadd.s32 %s71, 1
      %p75 = scmp.eq.s32.totalorder %s16, 1
      %p76 = scmp.ne.s32.totalorder %s71, %s73
      %p77 = scmp.eq.s32.totalorder %s16, 0
      %p78 = por %p76, %p77
      %p79 = scmp.ne.s32.totalorder %s71, %s73
      %p80 = scmp.eq.s32.totalorder %s21, 1
      %p81 = por %p79, %p80
      %p82 = scmp.ne.s32.totalorder %s73, %s74
      %p83 = scmp.eq.s32.totalorder %s21, 0
      %p84 = por %p82, %p83
      %p85 = scmp.ne.s32.totalorder %s73, %s74
      %p86 = scmp.eq.s32.totalorder %s22, 1
      %p87 = por %p85, %p86
      %p89 = scmp.ne.s32.totalorder %s74, %s88
      %p90 = scmp.eq.s32.totalorder %s22, 0
      %p91 = por %p89, %p90
      %s93 = sadd.s32 %s92, 1
      %p96 = scmp.eq.s32.totalorder %s16, 1
      %p97 = scmp.ne.s32.totalorder %s92, %s94
      %p98 = scmp.eq.s32.totalorder %s16, 0
      %p99 = por %p97, %p98
      %p100 = scmp.ne.s32.totalorder %s92, %s94
      %p101 = scmp.eq.s32.totalorder %s21, 1
      %p102 = por %p100, %p101
      %p103 = scmp.ne.s32.totalorder %s94, %s95
      %p104 = scmp.eq.s32.totalorder %s21, 0
      %p105 = por %p103, %p104
      %p106 = scmp.ne.s32.totalorder %s94, %s95
      %p107 = scmp.eq.s32.totalorder %s22, 1
      %p108 = por %p106, %p107
      %p110 = scmp.ne.s32.totalorder %s95, %s109
      %p111 = scmp.eq.s32.totalorder %s22, 0
      %p112 = por %p110, %p111
      %s114 = sadd.s32 %s113, 1
      %p117 = scmp.eq.s32.totalorder %s16, 1
      %p118 = scmp.ne.s32.totalorder %s113, %s115
      %p119 = scmp.eq.s32.totalorder %s16, 0
      %p120 = por %p118, %p119
      %p121 = scmp.ne.s32.totalorder %s113, %s115
      %p122 = scmp.eq.s32.totalorder %s21, 1
      %p123 = por %p121, %p122
      %p124 = scmp.ne.s32.totalorder %s115, %s116
      %p125 = scmp.eq.s32.totalorder %s21, 0
      %p126 = por %p124, %p125
      %p127 = scmp.ne.s32.totalorder %s115, %s116
      %p128 = scmp.eq.s32.totalorder %s22, 1
      %p129 = por %p127, %p128
      %p131 = scmp.ne.s32.totalorder %s116, %s130
      %p132 = scmp.eq.s32.totalorder %s22, 0
      %p133 = por %p131, %p132
      %s135 = sadd.s32 %s134, 1
      %p138 = scmp.eq.s32.totalorder %s16, 1
      %p139 = scmp.ne.s32.totalorder %s134, %s136
      %p140 = scmp.eq.s32.totalorder %s16, 0
      %p141 = por %p139, %p140
      %p142 = scmp.ne.s32.totalorder %s134, %s136
      %p143 = scmp.eq.s32.totalorder %s21, 1
      %p144 = por %p142, %p143
      %p145 = scmp.ne.s32.totalorder %s136, %s137
      %p146 = scmp.eq.s32.totalorder %s21, 0
      %p147 = por %p145, %p146
      %p148 = scmp.ne.s32.totalorder %s136, %s137
      %p149 = scmp.eq.s32.totalorder %s22, 1
      %p150 = por %p148, %p149
      %p152 = scmp.ne.s32.totalorder %s137, %s151
      %p153 = scmp.eq.s32.totalorder %s22, 0
      %p154 = por %p152, %p153
      %s156 = sadd.s32 %s155, 1
      %p159 = scmp.eq.s32.totalorder %s16, 1
      %p160 = scmp.ne.s32.totalorder %s155, %s157
      %p161 = scmp.eq.s32.totalorder %s16, 0
      %p162 = por %p160, %p161
      %p163 = scmp.ne.s32.totalorder %s155, %s157
      %p164 = scmp.eq.s32.totalorder %s21, 1
      %p165 = por %p163, %p164
      %p166 = scmp.ne.s32.totalorder %s157, %s158
      %p167 = scmp.eq.s32.totalorder %s21, 0
      %p168 = por %p166, %p167
      %p169 = scmp.ne.s32.totalorder %s157, %s158
      %p170 = scmp.eq.s32.totalorder %s22, 1
      %p171 = por %p169, %p170
      %p173 = scmp.ne.s32.totalorder %s158, %s172
      %p174 = scmp.eq.s32.totalorder %s22, 0
      %p175 = por %p173, %p174
      %s176 = ssub.s32 %s16, %s23
      %p177 = scmp.eq.s32.totalorder %s176, 0
      %s179 = sadd.s32 %s178, 1
      %s180 = scalar_select %p177, %s178, %s179
      %p183 = pneg %p177
      %p184 = scmp.eq.s32.totalorder %s16, 1
      %p185 = por %p183, %p184
      %p186 = scmp.ne.s32.totalorder %s178, %s181
      %p187 = scmp.eq.s32.totalorder %s16, 0
      %p188 = por %p186, %p187
      %p189 = scmp.ne.s32.totalorder %s178, %s181
      %p190 = scmp.eq.s32.totalorder %s21, 1
      %p191 = por %p189, %p190
      %p192 = scmp.ne.s32.totalorder %s181, %s182
      %p193 = scmp.eq.s32.totalorder %s21, 0
      %p194 = por %p192, %p193
      %p195 = scmp.ne.s32.totalorder %s181, %s182
      %p196 = scmp.eq.s32.totalorder %s22, 1
      %p197 = por %p195, %p196
      %p199 = scmp.ne.s32.totalorder %s182, %s198
      %p200 = scmp.eq.s32.totalorder %s22, 0
      %p201 = por %p199, %p200
      %p202 = scmp.le.s32.totalorder 1, %s16
      %p203 = scmp.lt.s32.totalorder %s16, 3
      %p204 = pnand %p202, %p203
      %p205 = pneg %p204
      // Predicated region
      $region9: #{tpu_custom_call.1} parent=5 // pred_check
        _
      $region10: #{tpu_custom_call.1} parent=5 // pred_check_branch
        %207 = sbr.rel (%p204) target = $region12
      $region11: #{tpu_custom_call.1} parent=5 // pred_region
        %s208 = ssub.s32 %s16, 1
        // Predicated region
        $region13: #{tpu_custom_call.1} parent=11 // pred_check
          %p209 = pneg %p63
        $region14: #{tpu_custom_call.1} parent=11 // pred_check_branch
          %211 = sbr.rel (%p209) target = $region16
        $region15: #{tpu_custom_call.1} parent=11 // pred_region
          _
        $region16: #{tpu_custom_call.1} parent=11 // pred_fallthru
          _
        // Predicated region
        $region17: #{tpu_custom_call.1} parent=11 // pred_check
          %p212 = pneg %p84
        $region18: #{tpu_custom_call.1} parent=11 // pred_check_branch
          %214 = sbr.rel (%p212) target = $region20
        $region19: #{tpu_custom_call.1} parent=11 // pred_region
          _
        $region20: #{tpu_custom_call.1} parent=11 // pred_fallthru
          _
        // Predicated region
        $region21: #{tpu_custom_call.1} parent=11 // pred_check
          %p215 = pneg %p105
        $region22: #{tpu_custom_call.1} parent=11 // pred_check_branch
          %217 = sbr.rel (%p215) target = $region24
        $region23: #{tpu_custom_call.1} parent=11 // pred_region
          _
        $region24: #{tpu_custom_call.1} parent=11 // pred_fallthru
          _
        // Predicated region
        $region25: #{tpu_custom_call.1} parent=11 // pred_check
          %p218 = pneg %p126
        $region26: #{tpu_custom_call.1} parent=11 // pred_check_branch
          %220 = sbr.rel (%p218) target = $region28
        $region27: #{tpu_custom_call.1} parent=11 // pred_region
          _
        $region28: #{tpu_custom_call.1} parent=11 // pred_fallthru
          _
        // Predicated region
        $region29: #{tpu_custom_call.1} parent=11 // pred_check
          %p221 = pneg %p147
        $region30: #{tpu_custom_call.1} parent=11 // pred_check_branch
          %223 = sbr.rel (%p221) target = $region32
        $region31: #{tpu_custom_call.1} parent=11 // pred_region
          _
        $region32: #{tpu_custom_call.1} parent=11 // pred_fallthru
          _
        // Predicated region
        $region33: #{tpu_custom_call.1} parent=11 // pred_check
          %p224 = pneg %p168
        $region34: #{tpu_custom_call.1} parent=11 // pred_check_branch
          %226 = sbr.rel (%p224) target = $region36
        $region35: #{tpu_custom_call.1} parent=11 // pred_region
          _
        $region36: #{tpu_custom_call.1} parent=11 // pred_fallthru
          _
      $region12: #{tpu_custom_call.1} parent=5 // pred_fallthru
        _
      %p227 = scmp.lt.s32.totalorder %s16, 2
      // Predicated region
      $region37: #{tpu_custom_call.1} parent=5 // pred_check
        %p228 = pneg %p227
      $region38: #{tpu_custom_call.1} parent=5 // pred_check_branch
        %230 = sbr.rel (%p228) target = $region40
      $region39: #{tpu_custom_call.1} parent=5 // pred_region
        // Predicated region
        $region41: #{tpu_custom_call.1} parent=39 // pred_check
          %p231 = pneg %p36
        $region42: #{tpu_custom_call.1} parent=39 // pred_check_branch
          %233 = sbr.rel (%p231) target = $region44
        $region43: #{tpu_custom_call.1} parent=39 // pred_region
          %p234 = scmp.lt.s32.totalorder %s16, 1
          %s235 = scalar_select %p234, %s16, 1
          %s236 = smul.addr %s235, 8
          %s237 = scalar_lea.vmem %s0, %s236
        $region44: #{tpu_custom_call.1} parent=39 // pred_fallthru
          _
      $region40: #{tpu_custom_call.1} parent=5 // pred_fallthru
        _
      %p238 = scmp.le.s32.totalorder 1, %s16
      %p239 = scmp.lt.s32.totalorder %s16, 3
      %p240 = pnand %p238, %p239
      %p241 = pneg %p240
      // Predicated region
      $region45: #{tpu_custom_call.1} parent=5 // pred_check
        _
      $region46: #{tpu_custom_call.1} parent=5 // pred_check_branch
        %243 = sbr.rel (%p240) target = $region48
      $region47: #{tpu_custom_call.1} parent=5 // pred_region
        %s244 = ssub.s32 %s16, 1
        %p245 = scmp.lt.s32.totalorder %s21, 1
        %s246 = scalar_select %p245, %s21, 1
        %s247 = smul.addr %s246, 8
        %s248 = scalar_lea.vmem %s0, %s247
        %p249 = pneg %p42
        %p250 = pneg %p39
        %p251 = pneg %p63
        %p252 = pneg %p60
        %p253 = pneg %p84
        %p254 = pneg %p81
        %p255 = pneg %p105
        %p256 = pneg %p102
        %p257 = pneg %p126
        %p258 = pneg %p123
        %p259 = pneg %p147
        %p260 = pneg %p144
        %p261 = pneg %p168
        %p262 = pneg %p165
        %p263 = pneg %p194
        %p264 = pneg %p191
        %s265 = sand.u32 %s181, 1
        %s266 = scalar_lea.sflag [#allocation4], %s265
        %s267 = sand.u32 %s181, 1
        %s268 = smul.addr %s267, 8
        %s269 = scalar_lea.vmem [#allocation3], %s268
        %p270 = scmp.lt.s32.totalorder %s21, 1
        %s271 = scalar_select %p270, %s21, 1
        %s272 = smul.addr %s271, 8
        %s273 = scalar_lea.vmem %s0, %s272
        %v275 = vld [vmem:[%s273] sm:$0xff]
        %v276 = vld [vmem:[%s1] sm:$0xff]
        %v277 = vld [vmem:[%s1 + $0x8] sm:$0x1]
        %v278 = vld [vmem:[%s2] sm:$0x1]
        %v279 = vld [vmem:[%s3] sm:$0xf]
        %v280 = vld [vmem:[%s3 + $0x4] sm:$0xf]
        %v281 = vld [vmem:[%s3 + $0x8] sm:$0xf]
        %v282 = vld [vmem:[%s3 + $0xc] sm:$0xf]
        %v283 = vld [vmem:[%s4] sm:$0xf]
        %v284 = vld [vmem:[%s4 + $0x4] sm:$0xf]
        %v285 = vld [vmem:[%s4 + $0x8] sm:$0xf]
        %v286 = vld [vmem:[%s4 + $0xc] sm:$0xf]
        %v287 = vld [vmem:[%s5] sm:$0xf]
        %v288 = vld [vmem:[%s5 + $0x4] sm:$0xf]
        %v289 = vld [vmem:[%s5 + $0x8] sm:$0xf]
        %v290 = vld [vmem:[%s5 + $0xc] sm:$0xf]
        %v291 = vld [vmem:[%s6] sm:$0xf]
        %v292 = vld [vmem:[%s6 + $0x4] sm:$0xf]
        %v293 = vld [vmem:[%s6 + $0x8] sm:$0xf]
        %v294 = vld [vmem:[%s6 + $0xc] sm:$0xf]
        %v295 = vld [vmem:[%s6 + $0x10] sm:$0xf]
        %v296 = vld [vmem:[%s6 + $0x14] sm:$0xf]
        %v297 = vld [vmem:[%s6 + $0x18] sm:$0xf]
        %v298 = vld [vmem:[%s6 + $0x1c] sm:$0xf]
        %vm299 = vcmask 261120
        %v300 = vsel %vm299, %v275, 0.0
        %301 = vadd.xlane.f32.xlu0 %v300
        %v302 = vpop.xlane.xlu0 %301
        %v303 = vrcp.pop 32.0
        %v304 = vmul.f32 32.0, %v303
        %v305 = vsub.f32 1.0, %v304
        %v306 = vmul.f32 %v303, %v305
        %v307 = vadd.f32 %v303, %v306
        %vm308 = vweird.f32 %v303
        %v309 = vsel %vm308, %v303, %v307
        %v310 = vmul.f32 %v302, %v309
        %v311 = vsub.f32 %v275, %v310
        %v312 = vmul.f32 %v311, %v311
        %v313 = vsel %vm299, %v312, 0.0
        %314 = vadd.xlane.f32.xlu0 %v313
        %v315 = vpop.xlane.xlu0 %314
        %v316 = vmul.f32 %v315, %v309
        %v317 = vadd.f32 %v316, 1e-05
        %v318 = vrsqrt.pop %v317
        %v319 = vmul.f32 %v318, %v317
        %v320 = vmul.f32 %v319, %v318
        %v321 = vmul.f32 0.5, %v320
        %v322 = vsub.f32 1.5, %v321
        %v323 = vmul.f32 %v318, %v322
        %vm324 = vweird.f32 %v317
        %vm325 = vweird.f32 %v318
        %vm326 = vmor %vm324, %vm325
        %v327 = vsel %vm326, %v318, %v323
        %v328 = vmul.f32 %v311, %v327
        %v329 = vperm.slane %v276, 0
        %v330 = vmul.f32 %v328, %v329
        %v331 = vperm.slane %v276, 1
        %v332 = vadd.f32 %v330, %v331
        %v333 = vpack.c.bf16 %v332, %v332
        %v338 = vunpack.c.l.b16 %v279
        %v339 = vunpack.c.l.b16 %v280
        %v340 = vunpack.c.l.b16 %v281
        %v341 = vunpack.c.l.b16 %v282
        %v342 = vpack.c.b16 %v339, %v338
        %v343 = vpack.c.b16 %v341, %v340
        %v347 = vsel %vm299, %v333, 0
        %349 = vmatpush.bf16.msra.mxu0 0
        %350 = vmatpush.bf16.msra.mxu0 0
        %351 = vmatpush.bf16.msra.mxu0 0
        %352 = vmatpush.bf16.msra.mxu0 0
        %353 = vmatpush.bf16.msra.mxu0 0
        %354 = vmatpush.bf16.msra.mxu0 0
        %355 = vmatpush.bf16.msra.mxu0 %v343
        %356 = vmatpush.bf16.msra.mxu0 %v342
        %357 = vmatmul.bf16.gmra.mxu0 %v347
        %v358 = vpop.f32.mrf.mxu0
        %v359 = vadd.f32 0.0, %v358
        %v360 = vpop.f32.mrf.mxu0
        %361 = vdwg.mxu0
        %v362 = vperm.slane %v276, 2
        %v363 = vadd.f32 %v359, %v362
        %v364 = vpack.c.bf16 %v363, %v363
        %v365 = vperm.slane %v276, 3
        %367 = vrot.lane.b32.xlu0 %v365, 32
        %v368 = vpop.permute.xlu0 %367
        %v370 = vadd.f32 %v359, %v368
        %v371 = vpack.c.bf16 %v370, %v370
        %v372 = vperm.slane %v276, 4
        %374 = vrot.lane.b32.xlu0 %v372, 64
        %v375 = vpop.permute.xlu0 %374
        %v377 = vadd.f32 %v359, %v375
        %v378 = vpack.c.bf16 %v377, %v377
        %v380 = vunpack.c.l.b16 %v371
        %v381 = vpack.c.b16 %v380, %v380
        %382 = vrot.lane.b32.xlu0 %v381, 96
        %v383 = vpop.permute.xlu0 %382
        %vm384 = vcmask 64512
        %v386 = vsel %vm384, %v364, 0
        %v389 = vsel %vm384, %v383, 0
        %391 = vmatpush.bf16.xpose.msra.mxu0 0
        %392 = vmatpush.bf16.xpose.msra.mxu0 0
        %393 = vmatpush.bf16.xpose.msra.mxu0 0
        %394 = vmatpush.bf16.xpose.msra.mxu0 0
        %395 = vmatpush.bf16.xpose.msra.mxu0 0
        %396 = vmatpush.bf16.xpose.msra.mxu0 0
        %397 = vmatpush.bf16.xpose.msra.mxu0 0
        %398 = vmatpush.bf16.xpose.msra.mxu0 %v389
        %399 = vmatmul.bf16.gmra.mxu0 %v386
        %v400 = vpop.f32.mrf.mxu0
        %v401 = vadd.f32 0.0, %v400
        %v402 = vpop.f32.mrf.mxu0
        %403 = vdwg.mxu0
        %v404 = vsel %vm384, %v401, -inf
        %405 = vmax.xlane.f32.xlu0 %v404
        %v406 = vpop.xlane.xlu0 %405
        %v407 = vsub.f32 %v401, %v406
        %v408 = vmul.f32 %v407, 1.442695
        %v409 = vpow.pop %v408
        %v410 = vsel %vm384, %v409, 0.0
        %411 = vadd.xlane.f32.xlu0 %v410
        %v412 = vpop.xlane.xlu0 %411
        %v413 = vrcp.pop %v412
        %v414 = vmul.f32 %v409, %v413
        %v415 = vpack.c.bf16 %v414, %v414
        %v417 = vunpack.c.l.b16 %v378
        %v418 = vpack.c.b16 %v417, %v417
        %419 = vrot.lane.b32.xlu0 %v418, 64
        %v420 = vpop.permute.xlu0 %419
        %v422 = vsel %vm384, %v415, 0
        %vm424 = vcmask 1043456
        %v426 = vsel %vm424, %v420, 0
        %428 = vmatpush.bf16.msra.mxu0 0
        %429 = vmatpush.bf16.msra.mxu0 0
        %430 = vmatpush.bf16.msra.mxu0 0
        %431 = vmatpush.bf16.msra.mxu0 0
        %432 = vmatpush.bf16.msra.mxu0 0
        %433 = vmatpush.bf16.msra.mxu0 0
        %434 = vmatpush.bf16.msra.mxu0 0
        %435 = vmatpush.bf16.msra.mxu0 %v426
        %436 = vmatmul.bf16.gmra.mxu0 %v422
        %v437 = vpop.f32.mrf.mxu0
        %v438 = vadd.f32 0.0, %v437
        %v439 = vpop.f32.mrf.mxu0
        %440 = vdwg.mxu0
        %441 = vst.msk [vmem:[#allocation2] sm:$0xff] %vm384, %v438
        %v443 = vunpack.c.l.b16 %v364
        %v444 = vpack.c.b16 %v443, %v443
        %445 = vrot.lane.b32.xlu0 %v444, 120
        %v446 = vpop.permute.xlu0 %445
        %447 = vrot.lane.b32.xlu0 %v381, 88
        %v448 = vpop.permute.xlu0 %447
        %v450 = vsel %vm384, %v446, 0
        %v453 = vsel %vm384, %v448, 0
        %455 = vmatpush.bf16.xpose.msra.mxu0 0
        %456 = vmatpush.bf16.xpose.msra.mxu0 0
        %457 = vmatpush.bf16.xpose.msra.mxu0 0
        %458 = vmatpush.bf16.xpose.msra.mxu0 0
        %459 = vmatpush.bf16.xpose.msra.mxu0 0
        %460 = vmatpush.bf16.xpose.msra.mxu0 0
        %461 = vmatpush.bf16.xpose.msra.mxu0 0
        %462 = vmatpush.bf16.xpose.msra.mxu0 %v453
        %463 = vmatmul.bf16.gmra.mxu0 %v450
        %v464 = vpop.f32.mrf.mxu0
        %v465 = vadd.f32 0.0, %v464
        %v466 = vpop.f32.mrf.mxu0
        %467 = vdwg.mxu0
        %v468 = vsel %vm384, %v465, -inf
        %469 = vmax.xlane.f32.xlu0 %v468
        %v470 = vpop.xlane.xlu0 %469
        %v471 = vsub.f32 %v465, %v470
        %v472 = vmul.f32 %v471, 1.442695
        %v473 = vpow.pop %v472
        %v474 = vsel %vm384, %v473, 0.0
        %475 = vadd.xlane.f32.xlu0 %v474
        %v476 = vpop.xlane.xlu0 %475
        %v477 = vrcp.pop %v476
        %v478 = vmul.f32 %v473, %v477
        %v479 = vpack.c.bf16 %v478, %v478
        %480 = vrot.lane.b32.xlu0 %v418, 56
        %v481 = vpop.permute.xlu0 %480
        %v483 = vsel %vm384, %v479, 0
        %v486 = vsel %vm424, %v481, 0
        %488 = vmatpush.bf16.msra.mxu0 0
        %489 = vmatpush.bf16.msra.mxu0 0
        %490 = vmatpush.bf16.msra.mxu0 0
        %491 = vmatpush.bf16.msra.mxu0 0
        %492 = vmatpush.bf16.msra.mxu0 0
        %493 = vmatpush.bf16.msra.mxu0 0
        %494 = vmatpush.bf16.msra.mxu0 0
        %495 = vmatpush.bf16.msra.mxu0 %v486
        %496 = vmatmul.bf16.gmra.mxu0 %v483
        %v497 = vpop.f32.mrf.mxu0
        %v498 = vadd.f32 0.0, %v497
        %v499 = vpop.f32.mrf.mxu0
        %500 = vdwg.mxu0
        %502 = vrot.lane.b32.xlu0 %v498, 8
        %v503 = vpop.permute.xlu0 %502
        %vm505 = vcmask 130112
        %506 = vst.msk [vmem:[#allocation2] sm:$0xff] %vm505, %v503
        %507 = vrot.lane.b32.xlu0 %v444, 112
        %v508 = vpop.permute.xlu0 %507
        %509 = vrot.lane.b32.xlu0 %v381, 80
        %v510 = vpop.permute.xlu0 %509
        %v512 = vsel %vm384, %v508, 0
        %v515 = vsel %vm384, %v510, 0
        %517 = vmatpush.bf16.xpose.msra.mxu0 0
        %518 = vmatpush.bf16.xpose.msra.mxu0 0
        %519 = vmatpush.bf16.xpose.msra.mxu0 0
        %520 = vmatpush.bf16.xpose.msra.mxu0 0
        %521 = vmatpush.bf16.xpose.msra.mxu0 0
        %522 = vmatpush.bf16.xpose.msra.mxu0 0
        %523 = vmatpush.bf16.xpose.msra.mxu0 0
        %524 = vmatpush.bf16.xpose.msra.mxu0 %v515
        %525 = vmatmul.bf16.gmra.mxu0 %v512
        %v526 = vpop.f32.mrf.mxu0
        %v527 = vadd.f32 0.0, %v526
        %v528 = vpop.f32.mrf.mxu0
        %529 = vdwg.mxu0
        %v530 = vsel %vm384, %v527, -inf
        %531 = vmax.xlane.f32.xlu0 %v530
        %v532 = vpop.xlane.xlu0 %531
        %v533 = vsub.f32 %v527, %v532
        %v534 = vmul.f32 %v533, 1.442695
        %v535 = vpow.pop %v534
        %v536 = vsel %vm384, %v535, 0.0
        %537 = vadd.xlane.f32.xlu0 %v536
        %v538 = vpop.xlane.xlu0 %537
        %v539 = vrcp.pop %v538
        %v540 = vmul.f32 %v535, %v539
        %v541 = vpack.c.bf16 %v540, %v540
        %542 = vrot.lane.b32.xlu0 %v418, 48
        %v543 = vpop.permute.xlu0 %542
        %v545 = vsel %vm384, %v541, 0
        %v548 = vsel %vm424, %v543, 0
        %550 = vmatpush.bf16.msra.mxu0 0
        %551 = vmatpush.bf16.msra.mxu0 0
        %552 = vmatpush.bf16.msra.mxu0 0
        %553 = vmatpush.bf16.msra.mxu0 0
        %554 = vmatpush.bf16.msra.mxu0 0
        %555 = vmatpush.bf16.msra.mxu0 0
        %556 = vmatpush.bf16.msra.mxu0 0
        %557 = vmatpush.bf16.msra.mxu0 %v548
        %558 = vmatmul.bf16.gmra.mxu0 %v545
        %v559 = vpop.f32.mrf.mxu0
        %v560 = vadd.f32 0.0, %v559
        %v561 = vpop.f32.mrf.mxu0
        %562 = vdwg.mxu0
        %564 = vrot.lane.b32.xlu0 %v560, 16
        %v565 = vpop.permute.xlu0 %564
        %vm567 = vcmask 195712
        %568 = vst.msk [vmem:[#allocation2] sm:$0xff] %vm567, %v565
        %569 = vrot.lane.b32.xlu0 %v444, 104
        %v570 = vpop.permute.xlu0 %569
        %571 = vrot.lane.b32.xlu0 %v381, 72
        %v572 = vpop.permute.xlu0 %571
        %v574 = vsel %vm384, %v570, 0
        %v577 = vsel %vm384, %v572, 0
        %579 = vmatpush.bf16.xpose.msra.mxu0 0
        %580 = vmatpush.bf16.xpose.msra.mxu0 0
        %581 = vmatpush.bf16.xpose.msra.mxu0 0
        %582 = vmatpush.bf16.xpose.msra.mxu0 0
        %583 = vmatpush.bf16.xpose.msra.mxu0 0
        %584 = vmatpush.bf16.xpose.msra.mxu0 0
        %585 = vmatpush.bf16.xpose.msra.mxu0 0
        %586 = vmatpush.bf16.xpose.msra.mxu0 %v577
        %587 = vmatmul.bf16.gmra.mxu0 %v574
        %v588 = vpop.f32.mrf.mxu0
        %v589 = vadd.f32 0.0, %v588
        %v590 = vpop.f32.mrf.mxu0
        %591 = vdwg.mxu0
        %v592 = vsel %vm384, %v589, -inf
        %593 = vmax.xlane.f32.xlu0 %v592
        %v594 = vpop.xlane.xlu0 %593
        %v595 = vsub.f32 %v589, %v594
        %v596 = vmul.f32 %v595, 1.442695
        %v597 = vpow.pop %v596
        %v598 = vsel %vm384, %v597, 0.0
        %599 = vadd.xlane.f32.xlu0 %v598
        %v600 = vpop.xlane.xlu0 %599
        %v601 = vrcp.pop %v600
        %v602 = vmul.f32 %v597, %v601
        %v603 = vpack.c.bf16 %v602, %v602
        %604 = vrot.lane.b32.xlu0 %v418, 40
        %v605 = vpop.permute.xlu0 %604
        %v607 = vsel %vm384, %v603, 0
        %v610 = vsel %vm424, %v605, 0
        %612 = vmatpush.bf16.msra.mxu0 0
        %613 = vmatpush.bf16.msra.mxu0 0
        %614 = vmatpush.bf16.msra.mxu0 0
        %615 = vmatpush.bf16.msra.mxu0 0
        %616 = vmatpush.bf16.msra.mxu0 0
        %617 = vmatpush.bf16.msra.mxu0 0
        %618 = vmatpush.bf16.msra.mxu0 0
        %619 = vmatpush.bf16.msra.mxu0 %v610
        %620 = vmatmul.bf16.gmra.mxu0 %v607
        %v621 = vpop.f32.mrf.mxu0
        %v622 = vadd.f32 0.0, %v621
        %v623 = vpop.f32.mrf.mxu0
        %624 = vdwg.mxu0
        %626 = vrot.lane.b32.xlu0 %v622, 24
        %v627 = vpop.permute.xlu0 %626
        %vm629 = vcmask 261312
        %630 = vst.msk [vmem:[#allocation2] sm:$0xff] %vm629, %v627
        %v631 = vld [vmem:[#allocation2] sm:$0xff]
        %v632 = vpack.c.bf16 %v631, %v631
        %v633 = vperm.slane %v276, 5
        %v638 = vunpack.c.l.b16 %v283
        %v639 = vunpack.c.l.b16 %v284
        %v640 = vunpack.c.l.b16 %v285
        %v641 = vunpack.c.l.b16 %v286
        %v642 = vpack.c.b16 %v639, %v638
        %v643 = vpack.c.b16 %v641, %v640
        %v647 = vsel %vm299, %v632, 0
        %649 = vmatpush.bf16.msra.mxu0 0
        %650 = vmatpush.bf16.msra.mxu0 0
        %651 = vmatpush.bf16.msra.mxu0 0
        %652 = vmatpush.bf16.msra.mxu0 0
        %653 = vmatpush.bf16.msra.mxu0 0
        %654 = vmatpush.bf16.msra.mxu0 0
        %655 = vmatpush.bf16.msra.mxu0 %v643
        %656 = vmatpush.bf16.msra.mxu0 %v642
        %657 = vmatmul.bf16.gmra.mxu0 %v647
        %v658 = vpop.f32.mrf.mxu0
        %v659 = vadd.f32 %v633, %v658
        %v660 = vpop.f32.mrf.mxu0
        %661 = vdwg.mxu0
        %v662 = vadd.f32 %v275, %v659
        %v663 = vsel %vm299, %v662, 0.0
        %664 = vadd.xlane.f32.xlu0 %v663
        %v665 = vpop.xlane.xlu0 %664
        %v666 = vmul.f32 %v665, %v309
        %v667 = vsub.f32 %v662, %v666
        %v668 = vmul.f32 %v667, %v667
        %v669 = vsel %vm299, %v668, 0.0
        %670 = vadd.xlane.f32.xlu0 %v669
        %v671 = vpop.xlane.xlu0 %670
        %v672 = vmul.f32 %v671, %v309
        %v673 = vadd.f32 %v672, 1e-05
        %v674 = vrsqrt.pop %v673
        %v675 = vmul.f32 %v674, %v673
        %v676 = vmul.f32 %v675, %v674
        %v677 = vmul.f32 0.5, %v676
        %v678 = vsub.f32 1.5, %v677
        %v679 = vmul.f32 %v674, %v678
        %vm680 = vweird.f32 %v673
        %vm681 = vweird.f32 %v674
        %vm682 = vmor %vm680, %vm681
        %v683 = vsel %vm682, %v674, %v679
        %v684 = vmul.f32 %v667, %v683
        %v685 = vperm.slane %v276, 6
        %v686 = vmul.f32 %v684, %v685
        %v687 = vperm.slane %v276, 7
        %v688 = vadd.f32 %v686, %v687
        %v689 = vpack.c.bf16 %v688, %v688
        %v691 = vperm.slane %v278, 0
        %v697 = vunpack.c.l.b16 %v287
        %v698 = vunpack.c.l.b16 %v288
        %v699 = vunpack.c.l.b16 %v289
        %v700 = vunpack.c.l.b16 %v290
        %v701 = vpack.c.b16 %v698, %v697
        %v702 = vpack.c.b16 %v700, %v699
        %v706 = vsel %vm299, %v689, 0
        %708 = vmatpush.bf16.msra.mxu0 0
        %709 = vmatpush.bf16.msra.mxu0 0
        %710 = vmatpush.bf16.msra.mxu0 0
        %711 = vmatpush.bf16.msra.mxu0 0
        %712 = vmatpush.bf16.msra.mxu0 0
        %713 = vmatpush.bf16.msra.mxu0 0
        %714 = vmatpush.bf16.msra.mxu0 %v702
        %715 = vmatpush.bf16.msra.mxu0 %v701
        %716 = vmatmul.bf16.gmra.mxu0 %v706
        %v717 = vpop.f32.mrf.mxu0
        %v718 = vadd.f32 %v691, %v717
        %v719 = vpop.f32.mrf.mxu0
        %720 = vdwg.mxu0
        %v721 = vmul.f32 %v718, %v718
        %v722 = vmul.f32 %v718, %v721
        %v723 = vmul.f32 %v722, 0.044715
        %v724 = vadd.f32 %v718, %v723
        %v725 = vmul.f32 %v724, 0.7978846
        %v726 = vtanh.pop %v725
        %v727 = vadd.f32 %v726, 1.0
        %v728 = vmul.f32 %v727, 0.5
        %v729 = vmul.f32 %v718, %v728
        %v730 = vpack.c.bf16 %v729, %v729
        %v739 = vunpack.c.l.b16 %v291
        %v740 = vunpack.c.l.b16 %v292
        %v741 = vunpack.c.l.b16 %v293
        %v742 = vunpack.c.l.b16 %v294
        %v743 = vunpack.c.l.b16 %v295
        %v744 = vunpack.c.l.b16 %v296
        %v745 = vunpack.c.l.b16 %v297
        %v746 = vunpack.c.l.b16 %v298
        %v747 = vpack.c.b16 %v740, %v739
        %v748 = vpack.c.b16 %v742, %v741
        %v749 = vpack.c.b16 %v744, %v743
        %v750 = vpack.c.b16 %v746, %v745
        %vm755 = vcmask 523264
        %v757 = vsel %vm755, %v730, 0
        %759 = vmatpush.bf16.msra.mxu0 0
        %760 = vmatpush.bf16.msra.mxu0 0
        %761 = vmatpush.bf16.msra.mxu0 0
        %762 = vmatpush.bf16.msra.mxu0 0
        %763 = vmatpush.bf16.msra.mxu0 %v750
        %764 = vmatpush.bf16.msra.mxu0 %v749
        %765 = vmatpush.bf16.msra.mxu0 %v748
        %766 = vmatpush.bf16.msra.mxu0 %v747
        %767 = vmatmul.bf16.gmra.mxu0 %v757
        %v768 = vpop.f32.mrf.mxu0
        %v769 = vadd.f32 0.0, %v768
        %v770 = vpop.f32.mrf.mxu0
        %771 = vdwg.mxu0
        %v772 = vadd.f32 %v662, %v769
        %v773 = vperm.slane %v277, 0
        %v774 = vadd.f32 %v772, %v773
        %s775 = scalar_lea.vmem %s1, 16
        %v776 = vld [vmem:[%s775] sm:$0xff]
        %v777 = vld [vmem:[%s775 + $0x8] sm:$0x1]
        %s778 = scalar_lea.vmem %s2, 1
        %v779 = vld [vmem:[%s778] sm:$0x1]
        %s780 = scalar_lea.vmem %s3, 16
        %v781 = vld [vmem:[%s780] sm:$0xf]
        %v782 = vld [vmem:[%s780 + $0x4] sm:$0xf]
        %v783 = vld [vmem:[%s780 + $0x8] sm:$0xf]
        %v784 = vld [vmem:[%s780 + $0xc] sm:$0xf]
        %s785 = scalar_lea.vmem %s4, 16
        %v786 = vld [vmem:[%s785] sm:$0xf]
        %v787 = vld [vmem:[%s785 + $0x4] sm:$0xf]
        %v788 = vld [vmem:[%s785 + $0x8] sm:$0xf]
        %v789 = vld [vmem:[%s785 + $0xc] sm:$0xf]
        %s790 = scalar_lea.vmem %s5, 16
        %v791 = vld [vmem:[%s790] sm:$0xf]
        %v792 = vld [vmem:[%s790 + $0x4] sm:$0xf]
        %v793 = vld [vmem:[%s790 + $0x8] sm:$0xf]
        %v794 = vld [vmem:[%s790 + $0xc] sm:$0xf]
        %s795 = scalar_lea.vmem %s6, 32
        %v796 = vld [vmem:[%s795] sm:$0xf]
        %v797 = vld [vmem:[%s795 + $0x4] sm:$0xf]
        %v798 = vld [vmem:[%s795 + $0x8] sm:$0xf]
        %v799 = vld [vmem:[%s795 + $0xc] sm:$0xf]
        %v800 = vld [vmem:[%s795 + $0x10] sm:$0xf]
        %v801 = vld [vmem:[%s795 + $0x14] sm:$0xf]
        %v802 = vld [vmem:[%s795 + $0x18] sm:$0xf]
        %v803 = vld [vmem:[%s795 + $0x1c] sm:$0xf]
        %v804 = vsel %vm299, %v774, 0.0
        %805 = vadd.xlane.f32.xlu0 %v804
        %v806 = vpop.xlane.xlu0 %805
        %v807 = vmul.f32 %v806, %v309
        %v808 = vsub.f32 %v774, %v807
        %v809 = vmul.f32 %v808, %v808
        %v810 = vsel %vm299, %v809, 0.0
        %811 = vadd.xlane.f32.xlu0 %v810
        %v812 = vpop.xlane.xlu0 %811
        %v813 = vmul.f32 %v812, %v309
        %v814 = vadd.f32 %v813, 1e-05
        %v815 = vrsqrt.pop %v814
        %v816 = vmul.f32 %v815, %v814
        %v817 = vmul.f32 %v816, %v815
        %v818 = vmul.f32 0.5, %v817
        %v819 = vsub.f32 1.5, %v818
        %v820 = vmul.f32 %v815, %v819
        %vm821 = vweird.f32 %v814
        %vm822 = vweird.f32 %v815
        %vm823 = vmor %vm821, %vm822
        %v824 = vsel %vm823, %v815, %v820
        %v825 = vmul.f32 %v808, %v824
        %v826 = vperm.slane %v776, 0
        %v827 = vmul.f32 %v825, %v826
        %v828 = vperm.slane %v776, 1
        %v829 = vadd.f32 %v827, %v828
        %v830 = vpack.c.bf16 %v829, %v829
        %v835 = vunpack.c.l.b16 %v781
        %v836 = vunpack.c.l.b16 %v782
        %v837 = vunpack.c.l.b16 %v783
        %v838 = vunpack.c.l.b16 %v784
        %v839 = vpack.c.b16 %v836, %v835
        %v840 = vpack.c.b16 %v838, %v837
        %v844 = vsel %vm299, %v830, 0
        %846 = vmatpush.bf16.msra.mxu0 0
        %847 = vmatpush.bf16.msra.mxu0 0
        %848 = vmatpush.bf16.msra.mxu0 0
        %849 = vmatpush.bf16.msra.mxu0 0
        %850 = vmatpush.bf16.msra.mxu0 0
        %851 = vmatpush.bf16.msra.mxu0 0
        %852 = vmatpush.bf16.msra.mxu0 %v840
        %853 = vmatpush.bf16.msra.mxu0 %v839
        %854 = vmatmul.bf16.gmra.mxu0 %v844
        %v855 = vpop.f32.mrf.mxu0
        %v856 = vadd.f32 0.0, %v855
        %v857 = vpop.f32.mrf.mxu0
        %858 = vdwg.mxu0
        %v859 = vperm.slane %v776, 2
        %v860 = vadd.f32 %v856, %v859
        %v861 = vpack.c.bf16 %v860, %v860
        %v862 = vperm.slane %v776, 3
        %864 = vrot.lane.b32.xlu0 %v862, 32
        %v865 = vpop.permute.xlu0 %864
        %v867 = vadd.f32 %v856, %v865
        %v868 = vpack.c.bf16 %v867, %v867
        %v869 = vperm.slane %v776, 4
        %871 = vrot.lane.b32.xlu0 %v869, 64
        %v872 = vpop.permute.xlu0 %871
        %v874 = vadd.f32 %v856, %v872
        %v875 = vpack.c.bf16 %v874, %v874
        %v877 = vunpack.c.l.b16 %v868
        %v878 = vpack.c.b16 %v877, %v877
        %879 = vrot.lane.b32.xlu0 %v878, 96
        %v880 = vpop.permute.xlu0 %879
        %v882 = vsel %vm384, %v861, 0
        %v885 = vsel %vm384, %v880, 0
        %887 = vmatpush.bf16.xpose.msra.mxu0 0
        %888 = vmatpush.bf16.xpose.msra.mxu0 0
        %889 = vmatpush.bf16.xpose.msra.mxu0 0
        %890 = vmatpush.bf16.xpose.msra.mxu0 0
        %891 = vmatpush.bf16.xpose.msra.mxu0 0
        %892 = vmatpush.bf16.xpose.msra.mxu0 0
        %893 = vmatpush.bf16.xpose.msra.mxu0 0
        %894 = vmatpush.bf16.xpose.msra.mxu0 %v885
        %895 = vmatmul.bf16.gmra.mxu0 %v882
        %v896 = vpop.f32.mrf.mxu0
        %v897 = vadd.f32 0.0, %v896
        %v898 = vpop.f32.mrf.mxu0
        %899 = vdwg.mxu0
        %v900 = vsel %vm384, %v897, -inf
        %901 = vmax.xlane.f32.xlu0 %v900
        %v902 = vpop.xlane.xlu0 %901
        %v903 = vsub.f32 %v897, %v902
        %v904 = vmul.f32 %v903, 1.442695
        %v905 = vpow.pop %v904
        %v906 = vsel %vm384, %v905, 0.0
        %907 = vadd.xlane.f32.xlu0 %v906
        %v908 = vpop.xlane.xlu0 %907
        %v909 = vrcp.pop %v908
        %v910 = vmul.f32 %v905, %v909
        %v911 = vpack.c.bf16 %v910, %v910
        %v913 = vunpack.c.l.b16 %v875
        %v914 = vpack.c.b16 %v913, %v913
        %915 = vrot.lane.b32.xlu0 %v914, 64
        %v916 = vpop.permute.xlu0 %915
        %v918 = vsel %vm384, %v911, 0
        %v921 = vsel %vm424, %v916, 0
        %923 = vmatpush.bf16.msra.mxu0 0
        %924 = vmatpush.bf16.msra.mxu0 0
        %925 = vmatpush.bf16.msra.mxu0 0
        %926 = vmatpush.bf16.msra.mxu0 0
        %927 = vmatpush.bf16.msra.mxu0 0
        %928 = vmatpush.bf16.msra.mxu0 0
        %929 = vmatpush.bf16.msra.mxu0 0
        %930 = vmatpush.bf16.msra.mxu0 %v921
        %931 = vmatmul.bf16.gmra.mxu0 %v918
        %v932 = vpop.f32.mrf.mxu0
        %v933 = vadd.f32 0.0, %v932
        %v934 = vpop.f32.mrf.mxu0
        %935 = vdwg.mxu0
        %936 = vst.msk [vmem:[#allocation2] sm:$0xff] %vm384, %v933
        %v938 = vunpack.c.l.b16 %v861
        %v939 = vpack.c.b16 %v938, %v938
        %940 = vrot.lane.b32.xlu0 %v939, 120
        %v941 = vpop.permute.xlu0 %940
        %942 = vrot.lane.b32.xlu0 %v878, 88
        %v943 = vpop.permute.xlu0 %942
        %v945 = vsel %vm384, %v941, 0
        %v948 = vsel %vm384, %v943, 0
        %950 = vmatpush.bf16.xpose.msra.mxu0 0
        %951 = vmatpush.bf16.xpose.msra.mxu0 0
        %952 = vmatpush.bf16.xpose.msra.mxu0 0
        %953 = vmatpush.bf16.xpose.msra.mxu0 0
        %954 = vmatpush.bf16.xpose.msra.mxu0 0
        %955 = vmatpush.bf16.xpose.msra.mxu0 0
        %956 = vmatpush.bf16.xpose.msra.mxu0 0
        %957 = vmatpush.bf16.xpose.msra.mxu0 %v948
        %958 = vmatmul.bf16.gmra.mxu0 %v945
        %v959 = vpop.f32.mrf.mxu0
        %v960 = vadd.f32 0.0, %v959
        %v961 = vpop.f32.mrf.mxu0
        %962 = vdwg.mxu0
        %v963 = vsel %vm384, %v960, -inf
        %964 = vmax.xlane.f32.xlu0 %v963
        %v965 = vpop.xlane.xlu0 %964
        %v966 = vsub.f32 %v960, %v965
        %v967 = vmul.f32 %v966, 1.442695
        %v968 = vpow.pop %v967
        %v969 = vsel %vm384, %v968, 0.0
        %970 = vadd.xlane.f32.xlu0 %v969
        %v971 = vpop.xlane.xlu0 %970
        %v972 = vrcp.pop %v971
        %v973 = vmul.f32 %v968, %v972
        %v974 = vpack.c.bf16 %v973, %v973
        %975 = vrot.lane.b32.xlu0 %v914, 56
        %v976 = vpop.permute.xlu0 %975
        %v978 = vsel %vm384, %v974, 0
        %v981 = vsel %vm424, %v976, 0
        %983 = vmatpush.bf16.msra.mxu0 0
        %984 = vmatpush.bf16.msra.mxu0 0
        %985 = vmatpush.bf16.msra.mxu0 0
        %986 = vmatpush.bf16.msra.mxu0 0
        %987 = vmatpush.bf16.msra.mxu0 0
        %988 = vmatpush.bf16.msra.mxu0 0
        %989 = vmatpush.bf16.msra.mxu0 0
        %990 = vmatpush.bf16.msra.mxu0 %v981
        %991 = vmatmul.bf16.gmra.mxu0 %v978
        %v992 = vpop.f32.mrf.mxu0
        %v993 = vadd.f32 0.0, %v992
        %v994 = vpop.f32.mrf.mxu0
        %995 = vdwg.mxu0
        %997 = vrot.lane.b32.xlu0 %v993, 8
        %v998 = vpop.permute.xlu0 %997
        %1000 = vst.msk [vmem:[#allocation2] sm:$0xff] %vm505, %v998
        %1001 = vrot.lane.b32.xlu0 %v939, 112
        %v1002 = vpop.permute.xlu0 %1001
        %1003 = vrot.lane.b32.xlu0 %v878, 80
        %v1004 = vpop.permute.xlu0 %1003
        %v1006 = vsel %vm384, %v1002, 0
        %v1009 = vsel %vm384, %v1004, 0
        %1011 = vmatpush.bf16.xpose.msra.mxu0 0
        %1012 = vmatpush.bf16.xpose.msra.mxu0 0
        %1013 = vmatpush.bf16.xpose.msra.mxu0 0
        %1014 = vmatpush.bf16.xpose.msra.mxu0 0
        %1015 = vmatpush.bf16.xpose.msra.mxu0 0
        %1016 = vmatpush.bf16.xpose.msra.mxu0 0
        %1017 = vmatpush.bf16.xpose.msra.mxu0 0
        %1018 = vmatpush.bf16.xpose.msra.mxu0 %v1009
        %1019 = vmatmul.bf16.gmra.mxu0 %v1006
        %v1020 = vpop.f32.mrf.mxu0
        %v1021 = vadd.f32 0.0, %v1020
        %v1022 = vpop.f32.mrf.mxu0
        %1023 = vdwg.mxu0
        %v1024 = vsel %vm384, %v1021, -inf
        %1025 = vmax.xlane.f32.xlu0 %v1024
        %v1026 = vpop.xlane.xlu0 %1025
        %v1027 = vsub.f32 %v1021, %v1026
        %v1028 = vmul.f32 %v1027, 1.442695
        %v1029 = vpow.pop %v1028
        %v1030 = vsel %vm384, %v1029, 0.0
        %1031 = vadd.xlane.f32.xlu0 %v1030
        %v1032 = vpop.xlane.xlu0 %1031
        %v1033 = vrcp.pop %v1032
        %v1034 = vmul.f32 %v1029, %v1033
        %v1035 = vpack.c.bf16 %v1034, %v1034
        %1036 = vrot.lane.b32.xlu0 %v914, 48
        %v1037 = vpop.permute.xlu0 %1036
        %v1039 = vsel %vm384, %v1035, 0
        %v1042 = vsel %vm424, %v1037, 0
        %1044 = vmatpush.bf16.msra.mxu0 0
        %1045 = vmatpush.bf16.msra.mxu0 0
        %1046 = vmatpush.bf16.msra.mxu0 0
        %1047 = vmatpush.bf16.msra.mxu0 0
        %1048 = vmatpush.bf16.msra.mxu0 0
        %1049 = vmatpush.bf16.msra.mxu0 0
        %1050 = vmatpush.bf16.msra.mxu0 0
        %1051 = vmatpush.bf16.msra.mxu0 %v1042
        %1052 = vmatmul.bf16.gmra.mxu0 %v1039
        %v1053 = vpop.f32.mrf.mxu0
        %v1054 = vadd.f32 0.0, %v1053
        %v1055 = vpop.f32.mrf.mxu0
        %1056 = vdwg.mxu0
        %1058 = vrot.lane.b32.xlu0 %v1054, 16
        %v1059 = vpop.permute.xlu0 %1058
        %1061 = vst.msk [vmem:[#allocation2] sm:$0xff] %vm567, %v1059
        %1062 = vrot.lane.b32.xlu0 %v939, 104
        %v1063 = vpop.permute.xlu0 %1062
        %1064 = vrot.lane.b32.xlu0 %v878, 72
        %v1065 = vpop.permute.xlu0 %1064
        %v1067 = vsel %vm384, %v1063, 0
        %v1070 = vsel %vm384, %v1065, 0
        %1072 = vmatpush.bf16.xpose.msra.mxu0 0
        %1073 = vmatpush.bf16.xpose.msra.mxu0 0
        %1074 = vmatpush.bf16.xpose.msra.mxu0 0
        %1075 = vmatpush.bf16.xpose.msra.mxu0 0
        %1076 = vmatpush.bf16.xpose.msra.mxu0 0
        %1077 = vmatpush.bf16.xpose.msra.mxu0 0
        %1078 = vmatpush.bf16.xpose.msra.mxu0 0
        %1079 = vmatpush.bf16.xpose.msra.mxu0 %v1070
        %1080 = vmatmul.bf16.gmra.mxu0 %v1067
        %v1081 = vpop.f32.mrf.mxu0
        %v1082 = vadd.f32 0.0, %v1081
        %v1083 = vpop.f32.mrf.mxu0
        %1084 = vdwg.mxu0
        %v1085 = vsel %vm384, %v1082, -inf
        %1086 = vmax.xlane.f32.xlu0 %v1085
        %v1087 = vpop.xlane.xlu0 %1086
        %v1088 = vsub.f32 %v1082, %v1087
        %v1089 = vmul.f32 %v1088, 1.442695
        %v1090 = vpow.pop %v1089
        %v1091 = vsel %vm384, %v1090, 0.0
        %1092 = vadd.xlane.f32.xlu0 %v1091
        %v1093 = vpop.xlane.xlu0 %1092
        %v1094 = vrcp.pop %v1093
        %v1095 = vmul.f32 %v1090, %v1094
        %v1096 = vpack.c.bf16 %v1095, %v1095
        %1097 = vrot.lane.b32.xlu0 %v914, 40
        %v1098 = vpop.permute.xlu0 %1097
        %v1100 = vsel %vm384, %v1096, 0
        %v1103 = vsel %vm424, %v1098, 0
        %1105 = vmatpush.bf16.msra.mxu0 0
        %1106 = vmatpush.bf16.msra.mxu0 0
        %1107 = vmatpush.bf16.msra.mxu0 0
        %1108 = vmatpush.bf16.msra.mxu0 0
        %1109 = vmatpush.bf16.msra.mxu0 0
        %1110 = vmatpush.bf16.msra.mxu0 0
        %1111 = vmatpush.bf16.msra.mxu0 0
        %1112 = vmatpush.bf16.msra.mxu0 %v1103
        %1113 = vmatmul.bf16.gmra.mxu0 %v1100
        %v1114 = vpop.f32.mrf.mxu0
        %v1115 = vadd.f32 0.0, %v1114
        %v1116 = vpop.f32.mrf.mxu0
        %1117 = vdwg.mxu0
        %1119 = vrot.lane.b32.xlu0 %v1115, 24
        %v1120 = vpop.permute.xlu0 %1119
        %1122 = vst.msk [vmem:[#allocation2] sm:$0xff] %vm629, %v1120
        %v1123 = vld [vmem:[#allocation2] sm:$0xff]
        %v1124 = vpack.c.bf16 %v1123, %v1123
        %v1125 = vperm.slane %v776, 5
        %v1130 = vunpack.c.l.b16 %v786
        %v1131 = vunpack.c.l.b16 %v787
        %v1132 = vunpack.c.l.b16 %v788
        %v1133 = vunpack.c.l.b16 %v789
        %v1134 = vpack.c.b16 %v1131, %v1130
        %v1135 = vpack.c.b16 %v1133, %v1132
        %v1139 = vsel %vm299, %v1124, 0
        %1141 = vmatpush.bf16.msra.mxu0 0
        %1142 = vmatpush.bf16.msra.mxu0 0
        %1143 = vmatpush.bf16.msra.mxu0 0
        %1144 = vmatpush.bf16.msra.mxu0 0
        %1145 = vmatpush.bf16.msra.mxu0 0
        %1146 = vmatpush.bf16.msra.mxu0 0
        %1147 = vmatpush.bf16.msra.mxu0 %v1135
        %1148 = vmatpush.bf16.msra.mxu0 %v1134
        %1149 = vmatmul.bf16.gmra.mxu0 %v1139
        %v1150 = vpop.f32.mrf.mxu0
        %v1151 = vadd.f32 %v1125, %v1150
        %v1152 = vpop.f32.mrf.mxu0
        %1153 = vdwg.mxu0
        %v1154 = vadd.f32 %v774, %v1151
        %v1155 = vsel %vm299, %v1154, 0.0
        %1156 = vadd.xlane.f32.xlu0 %v1155
        %v1157 = vpop.xlane.xlu0 %1156
        %v1158 = vmul.f32 %v1157, %v309
        %v1159 = vsub.f32 %v1154, %v1158
        %v1160 = vmul.f32 %v1159, %v1159
        %v1161 = vsel %vm299, %v1160, 0.0
        %1162 = vadd.xlane.f32.xlu0 %v1161
        %v1163 = vpop.xlane.xlu0 %1162
        %v1164 = vmul.f32 %v1163, %v309
        %v1165 = vadd.f32 %v1164, 1e-05
        %v1166 = vrsqrt.pop %v1165
        %v1167 = vmul.f32 %v1166, %v1165
        %v1168 = vmul.f32 %v1167, %v1166
        %v1169 = vmul.f32 0.5, %v1168
        %v1170 = vsub.f32 1.5, %v1169
        %v1171 = vmul.f32 %v1166, %v1170
        %vm1172 = vweird.f32 %v1165
        %vm1173 = vweird.f32 %v1166
        %vm1174 = vmor %vm1172, %vm1173
        %v1175 = vsel %vm1174, %v1166, %v1171
        %v1176 = vmul.f32 %v1159, %v1175
        %v1177 = vperm.slane %v776, 6
        %v1178 = vmul.f32 %v1176, %v1177
        %v1179 = vperm.slane %v776, 7
        %v1180 = vadd.f32 %v1178, %v1179
        %v1181 = vpack.c.bf16 %v1180, %v1180
        %v1183 = vperm.slane %v779, 0
        %v1189 = vunpack.c.l.b16 %v791
        %v1190 = vunpack.c.l.b16 %v792
        %v1191 = vunpack.c.l.b16 %v793
        %v1192 = vunpack.c.l.b16 %v794
        %v1193 = vpack.c.b16 %v1190, %v1189
        %v1194 = vpack.c.b16 %v1192, %v1191
        %v1198 = vsel %vm299, %v1181, 0
        %1200 = vmatpush.bf16.msra.mxu0 0
        %1201 = vmatpush.bf16.msra.mxu0 0
        %1202 = vmatpush.bf16.msra.mxu0 0
        %1203 = vmatpush.bf16.msra.mxu0 0
        %1204 = vmatpush.bf16.msra.mxu0 0
        %1205 = vmatpush.bf16.msra.mxu0 0
        %1206 = vmatpush.bf16.msra.mxu0 %v1194
        %1207 = vmatpush.bf16.msra.mxu0 %v1193
        %1208 = vmatmul.bf16.gmra.mxu0 %v1198
        %v1209 = vpop.f32.mrf.mxu0
        %v1210 = vadd.f32 %v1183, %v1209
        %v1211 = vpop.f32.mrf.mxu0
        %1212 = vdwg.mxu0
        %v1213 = vmul.f32 %v1210, %v1210
        %v1214 = vmul.f32 %v1210, %v1213
        %v1215 = vmul.f32 %v1214, 0.044715
        %v1216 = vadd.f32 %v1210, %v1215
        %v1217 = vmul.f32 %v1216, 0.7978846
        %v1218 = vtanh.pop %v1217
        %v1219 = vadd.f32 %v1218, 1.0
        %v1220 = vmul.f32 %v1219, 0.5
        %v1221 = vmul.f32 %v1210, %v1220
        %v1222 = vpack.c.bf16 %v1221, %v1221
        %v1231 = vunpack.c.l.b16 %v796
        %v1232 = vunpack.c.l.b16 %v797
        %v1233 = vunpack.c.l.b16 %v798
        %v1234 = vunpack.c.l.b16 %v799
        %v1235 = vunpack.c.l.b16 %v800
        %v1236 = vunpack.c.l.b16 %v801
        %v1237 = vunpack.c.l.b16 %v802
        %v1238 = vunpack.c.l.b16 %v803
        %v1239 = vpack.c.b16 %v1232, %v1231
        %v1240 = vpack.c.b16 %v1234, %v1233
        %v1241 = vpack.c.b16 %v1236, %v1235
        %v1242 = vpack.c.b16 %v1238, %v1237
        %v1248 = vsel %vm755, %v1222, 0
        %1250 = vmatpush.bf16.msra.mxu0 0
        %1251 = vmatpush.bf16.msra.mxu0 0
        %1252 = vmatpush.bf16.msra.mxu0 0
        %1253 = vmatpush.bf16.msra.mxu0 0
        %1254 = vmatpush.bf16.msra.mxu0 %v1242
        %1255 = vmatpush.bf16.msra.mxu0 %v1241
        %1256 = vmatpush.bf16.msra.mxu0 %v1240
        %1257 = vmatpush.bf16.msra.mxu0 %v1239
        %1258 = vmatmul.bf16.gmra.mxu0 %v1248
        %v1259 = vpop.f32.mrf.mxu0
        %v1260 = vadd.f32 0.0, %v1259
        %v1261 = vpop.f32.mrf.mxu0
        %1262 = vdwg.mxu0
        %v1263 = vadd.f32 %v1154, %v1260
        %v1264 = vperm.slane %v777, 0
        %v1265 = vadd.f32 %v1263, %v1264
        %1266 = vst.msk [vmem:[%s269] sm:$0xff] %vm299, %v1265
        %s1267 = sand.u32 %s181, 1
        %s1268 = scalar_lea.sflag [#allocation4], %s1267
        %s1269 = sand.u32 %s181, 1
        %s1270 = smul.addr %s1269, 8
        %s1271 = scalar_lea.vmem [#allocation3], %s1270
        // Predicated region
        $region49: #{tpu_custom_call.1} parent=47 // pred_check
          %p1272 = pneg %p191
        $region50: #{tpu_custom_call.1} parent=47 // pred_check_branch
          %1274 = sbr.rel (%p1272) target = $region52
        $region51: #{tpu_custom_call.1} parent=47 // pred_region
          %1276 = vsyncadd %s1268, 0
          %s1277 = smul.addr %s21, 8
          %s1278 = scalar_lea.hbm %s7, %s1277
          %s1280 = sshll.u32 %s1271, 4
          %s1281 = int_to_ptr.vmem [resolvable:$true] %s1280
          %s1282 = sshll.u32 %s1278, 4
          %s1283 = int_to_ptr.hbm [resolvable:$true] %s1282
          %1285 = dma.vmem_to_hbm [thread:$0]  %s1281, 128, %s1283, %s1268
        $region52: #{tpu_custom_call.1} parent=47 // pred_fallthru
          _
      $region48: #{tpu_custom_call.1} parent=5 // pred_fallthru
        _
      %p1286 = scmp.le.s32.totalorder 2, %s16
      // Predicated region
      $region53: #{tpu_custom_call.1} parent=5 // pred_check
        %p1287 = pneg %p1286
      $region54: #{tpu_custom_call.1} parent=5 // pred_check_branch
        %1289 = sbr.rel (%p1287) target = $region56
      $region55: #{tpu_custom_call.1} parent=5 // pred_region
        %s1290 = ssub.s32 %s16, 2
        // Predicated region
        $region57: #{tpu_custom_call.1} parent=55 // pred_check
          %p1291 = pneg %p197
        $region58: #{tpu_custom_call.1} parent=55 // pred_check_branch
          %1293 = sbr.rel (%p1291) target = $region60
        $region59: #{tpu_custom_call.1} parent=55 // pred_region
          %s1294 = sand.u32 %s182, 1
          %s1295 = scalar_lea.sflag [#allocation4], %s1294
          %s1296 = sand.u32 %s182, 1
          %s1297 = smul.addr %s1296, 8
          %s1298 = scalar_lea.vmem [#allocation3], %s1297
          %1300 = dma.done %s1295, 128
        $region60: #{tpu_custom_call.1} parent=55 // pred_fallthru
          _
      $region56: #{tpu_custom_call.1} parent=5 // pred_fallthru
        _
    $region6: #{tpu_custom_call.1} parent=1 // loop_footer
      %s20 = sadd.s32 1, %s16
    $region7: #{tpu_custom_call.1} parent=1 // loop_footer_branch
      %15 = sbr.rel target = $region3
    $region8: #{tpu_custom_call.1} parent=1 // loop_exit
      _
    %1301 = vsyncpa [#allocation4], 1
    %s1302 = scalar_lea.sflag [#allocation4], 1
    %1303 = vsyncpa %s1302, 1

</llo_original>
